<compile_context>
chip_gen: v5e
topology: v5e:2x2
jax: 0.10.0
libtpu: 0.0.40
codegen_flags: <defaults>
</compile_context>

<pallas_src>
import functools

import jax
import jax.numpy as jnp
import numpy as np
from jax.experimental import pallas as pl
from jax.experimental.pallas import tpu as pltpu

# Fill value for padded / out-of-range vocab columns: exp(-1e9) == 0 and
# 0 * (-1e9) == -0.0, so masked columns contribute nothing to max or the
# entropy sum (never use -inf: 0 * inf = NaN).
_NEG_FILL = -1e9


def _round_up(x: int, m: int) -> int:
    return ((x + m - 1) // m) * m


# ----------------------------------------------------------------------------
# Pallas kernel
# ----------------------------------------------------------------------------
def _lambda_net_kernel(logp_ref, xk_ref, w_xk_ref, w23_ref, vecs_ref, out_ref,
                       m_sc, s_sc, *, hidden_dim: int, optimize_beta: bool,
                       vocab_size: int, tile_v: int, exp_in_bf16: bool):
    j = pl.program_id(1)
    last_j = pl.num_programs(1) - 1

    @pl.when(j == 0)
    def _init():
        m_sc[...] = jnp.full_like(m_sc, _NEG_FILL)
        s_sc[...] = jnp.zeros_like(s_sc)

    # ---- streamed [tile_n, tile_v] vocab reduction (dominant, mem-bound) ----
    # Lane-dense accumulation: per 128-lane chunk, pure elementwise max / add
    # into (tile_n, 128) scratch.  Cross-lane reduce happens only in finalize.
    n_chunks = tile_v // 128

    def _accumulate(masked: bool):
        for c in range(n_chunks):
            x = logp_ref[:, c * 128:(c + 1) * 128]          # lane-aligned slice
            if masked:
                col = (jax.lax.broadcasted_iota(jnp.int32, x.shape, 1)
                       + (j * tile_v + c * 128))
                x = jnp.where(col < vocab_size, x, _NEG_FILL)
            x = x.astype(jnp.float32)
            m_sc[...] = jnp.maximum(m_sc[...], x)            # running max(logp)
            if exp_in_bf16:
                # v6e/v7x: bf16 exp/mul (half EUP/VPU work), f32 accumulation.
                xb = x.astype(jnp.bfloat16)
                prod = jnp.exp(xb) * xb
            else:
                prod = jnp.exp(x) * x
            s_sc[...] = s_sc[...] + prod                     # running sum p*logp

    if vocab_size % tile_v == 0:
        _accumulate(False)
    else:
        # Column mask is only needed (and only paid for) on the last vocab tile.
        @pl.when(j != last_j)
        def _():
            _accumulate(False)

        @pl.when(j == last_j)
        def _():
            _accumulate(True)

    # ---- finalize once per token tile: fused projections + MLP head ----
    @pl.when(j == last_j)
    def _finalize():
        H = hidden_dim
        # single cross-lane reduce of the lane-dense partials
        max_logp = jnp.max(m_sc[...], axis=1, keepdims=True)       # [tile_n, 1]
        max_conf = jnp.exp(max_logp)            # exp(max logp) == max exp(logp)
        entropy = jnp.sum(s_sc[...], axis=1, keepdims=True)        # sum p*logp

        vecs = vecs_ref[...]                    # [8, H] packed small params
        v_conf = vecs[0:1, :]
        v_ent = vecs[1:2, :]
        b1f = vecs[2:3, :]
        b2 = vecs[3:4, :]
        b3 = vecs[4:5, :]
        w4_row = vecs[5:6, :]
        b4 = vecs[6:7, 0:1]

        xk = xk_ref[...].astype(jnp.float32)    # [tile_n, dk_pad]
        h = jnp.dot(xk, w_xk_ref[...], preferred_element_type=jnp.float32)
        h = jnp.maximum(h + max_conf * v_conf + entropy * v_ent + b1f, 0.0)
        h = jnp.maximum(
            jnp.dot(h, w23_ref[0:H, :], preferred_element_type=jnp.float32) + b2,
            0.0)
        h = jnp.maximum(
            jnp.dot(h, w23_ref[H:2 * H, :],
                    preferred_element_type=jnp.float32) + b3, 0.0)
        # Final Linear(H, 1): multiply + row reduce (avoids a 1-lane matmul).
        logit = jnp.sum(h * w4_row, axis=1, keepdims=True) + b4    # [tile_n, 1]

        if optimize_beta:
            out_ref[...] = 1.0 + logit
        else:
            out_ref[...] = jax.nn.sigmoid(logit)


# ----------------------------------------------------------------------------
# Parameter construction (deterministic, in-script; torch Linear layout:
# activations [N, in], weights stored transposed as [in, out]).
# ----------------------------------------------------------------------------
def init_params(key, model_dim, hidden_dim, projection_size):
    assert hidden_dim == projection_size, \
        "the torch module only shape-checks when hidden_dim == projection_size"
    input_dim = 4 * projection_size
    ks = jax.random.split(key, 16)

    def linear(kw, kb, fan_in, fan_out):
        bound = 1.0 / np.sqrt(fan_in)
        w = jax.random.uniform(kw, (fan_in, fan_out), jnp.float32, -bound, bound)
        b = jax.random.uniform(kb, (1, fan_out), jnp.float32, -bound, bound)
        return w, b

    p = {}
    p["w_ctx"], p["b_ctx"] = linear(ks[0], ks[1], model_dim, hidden_dim)
    p["w_conf"], p["b_conf"] = linear(ks[2], ks[3], 1, hidden_dim)
    # 'lm_entropy' projection exists in __init__ but is unused in forward.
    p["w_knn"], p["b_knn"] = linear(ks[4], ks[5], 10, hidden_dim)
    p["w1"], p["b1"] = linear(ks[6], ks[7], input_dim, hidden_dim)
    p["w2"], p["b2"] = linear(ks[8], ks[9], hidden_dim, hidden_dim)
    p["w3"], p["b3"] = linear(ks[10], ks[11], hidden_dim, hidden_dim)
    p["w4"], p["b4"] = linear(ks[12], ks[13], hidden_dim, 1)
    return p


# ----------------------------------------------------------------------------
# One-time wrapper-side weight fusion (done in float64 on host so the fused
# weights match the unfused torch math to f32 precision; zero per-call cost).
# ----------------------------------------------------------------------------
def prepare_kernel_params(params, model_dim, hidden_dim):
    H = hidden_dim
    f64 = lambda a: np.asarray(a, np.float64)
    w1 = f64(params["w1"])                                  # [4H, H]
    W1c, W1f, W1e, W1k = w1[0:H], w1[H:2 * H], w1[2 * H:3 * H], w1[3 * H:4 * H]

    w_x = f64(params["w_ctx"]) @ W1c                        # [D, H]
    w_k = f64(params["w_knn"]) @ W1k                        # [10, H]
    v_conf = f64(params["w_conf"]) @ W1f                    # [1, H]
    v_ent = f64(params["w_conf"]) @ W1e                     # [1, H] (w_conf reused!)
    b_fused = (f64(params["b_ctx"]) @ W1c + f64(params["b_conf"]) @ W1f
               + f64(params["b_conf"]) @ W1e + f64(params["b_knn"]) @ W1k
               + f64(params["b1"]))

    dk = model_dim + 10
    dk_pad = _round_up(dk, 128)                             # lane-dense fused input
    w_xk = np.zeros((dk_pad, H), np.float64)
    w_xk[:model_dim] = w_x
    w_xk[model_dim:dk] = w_k

    w23 = np.concatenate([f64(params["w2"]), f64(params["w3"])], axis=0)  # [2H, H]

    vecs = np.zeros((8, H), np.float64)
    vecs[0] = v_conf[0]
    vecs[1] = v_ent[0]
    vecs[2] = b_fused[0]
    vecs[3] = f64(params["b2"])[0]
    vecs[4] = f64(params["b3"])[0]
    vecs[5] = f64(params["w4"])[:, 0]
    vecs[6, 0] = f64(params["b4"])[0, 0]

    return {"w_xk": jnp.asarray(w_xk, jnp.float32),
            "w23": jnp.asarray(w23, jnp.float32),
            "vecs": jnp.asarray(vecs, jnp.float32),
            "hidden_dim": H,
            "model_dim": model_dim}


# ----------------------------------------------------------------------------
# Forward wrapper: direct streaming of the source log-probs (no copy),
# small [flat, D+10] activation prep, then pallas_call and a tiny row gather.
# ----------------------------------------------------------------------------
def lambda_network_forward(fused, contextual_rep, lm_log_probs, knn_dist, mask,
                           optimize_beta=False, tile_n=512, tile_v=4096,
                           exp_in_bf16=False):
    H = fused["hidden_dim"]
    D = fused["model_dim"]
    dk_pad = fused["w_xk"].shape[0]

    mask_flat = jnp.reshape(jnp.asarray(mask), (-1,))
    flat = int(mask_flat.shape[0])
    assert contextual_rep.shape[-1] == D
    V = lm_log_probs.shape[-1]
    n_valid = knn_dist.shape[0]        # rows kept by the mask (static from shape)
    assert knn_dist.shape[1] == 10

    # ---- tile selection -----------------------------------------------------
    tile_v = min(_round_up(int(tile_v), 128), _round_up(V, 128))
    tile_n = max(8, _round_up(min(int(tile_n), flat), 8))
    if flat > 8:
        # keep >= 2 token tiles so the "parallel" axis shards across v7x's 2 TCs
        tile_n = min(tile_n, _round_up(pl.cdiv(flat, 2), 8))

    grid = (pl.cdiv(flat, tile_n), pl.cdiv(V, tile_v))

    # ---- dominant stream: read the source f32 log-probs directly (free reshape,
    # no gathered / padded / recast copy).  Rows that are masked off (or padded
    # past `flat` in the last tile) are still streamed but their outputs are
    # simply never gathered.
    logp2d = jnp.reshape(lm_log_probs, (flat, V))

    # ---- small activation stream: [x | knn scattered to flat layout] --------
    idx = jnp.nonzero(mask_flat, size=n_valid, fill_value=0)[0]    # static size
    x2d = jnp.reshape(contextual_rep, (flat, D)).astype(jnp.float32)
    knn_flat = jnp.zeros((flat, 10), jnp.float32).at[idx].set(
        jnp.asarray(knn_dist, jnp.float32))
    xk = jnp.zeros((flat, dk_pad), jnp.float32)
    xk = xk.at[:, :D].set(x2d).at[:, D:D + 10].set(knn_flat)

    # ---- VMEM budget (double-buffered logp/xk blocks + weights + scratch) ---
    itemsize = jnp.dtype(logp2d.dtype).itemsize
    w_bytes = 4 * (fused["w_xk"].size + fused["w23"].size + fused["vecs"].size)
    vmem_limit = (2 * tile_n * tile_v * itemsize          # logp double buffer
                  + 2 * tile_n * dk_pad * 4               # xk double buffer
                  + 2 * w_bytes
                  + 2 * tile_n * 128 * 4                  # lane-dense scratch
                  + (8 << 20))                            # temporaries headroom
    vmem_limit = int(max(32 << 20, min(vmem_limit, 60 << 20)))

    cost = pl.CostEstimate(
        flops=int(5 * flat * V
                  + flat * (2 * dk_pad * H + 4 * H * H + 4 * H)),
        transcendentals=int(flat * V),
        bytes_accessed=int(flat * V * itemsize + flat * dk_pad * 4
                           + flat * 4 + w_bytes),
    )

    out = pl.pallas_call(
        functools.partial(_lambda_net_kernel, hidden_dim=H,
                          optimize_beta=optimize_beta, vocab_size=V,
                          tile_v=tile_v, exp_in_bf16=exp_in_bf16),
        out_shape=jax.ShapeDtypeStruct((flat, 1), jnp.float32),
        grid_spec=pltpu.PrefetchScalarGridSpec(
            num_scalar_prefetch=0,
            grid=grid,
            in_specs=[
                # streamed [N, V] log-probs, read straight from the source
                pl.BlockSpec((tile_n, tile_v), lambda i, j: (i, j)),
                # fused [x | knn] activations: fetched once per token tile
                pl.BlockSpec((tile_n, dk_pad), lambda i, j: (i, 0)),
                # weights: constant index maps -> DMA'd once, VMEM-resident
                pl.BlockSpec(fused["w_xk"].shape, lambda i, j: (0, 0)),
                pl.BlockSpec(fused["w23"].shape, lambda i, j: (0, 0)),
                pl.BlockSpec(fused["vecs"].shape, lambda i, j: (0, 0)),
            ],
            out_specs=pl.BlockSpec((tile_n, 1), lambda i, j: (i, 0)),
            scratch_shapes=[pltpu.VMEM((tile_n, 128), jnp.float32),   # run. max
                            pltpu.VMEM((tile_n, 128), jnp.float32)],  # run. sum
        ),
        compiler_params=pltpu.CompilerParams(
            dimension_semantics=("parallel", "arbitrary"),
            vmem_limit_bytes=vmem_limit),
        cost_estimate=cost,
    )(logp2d, xk, fused["w_xk"], fused["w23"], fused["vecs"])

    out_valid = jnp.take(out, idx, axis=0)     # gather valid rows, in mask order
    if optimize_beta:
        return out_valid                       # [N, 1]  (1 + logit)
    return out_valid[:, 0]                     # [N]     (sigmoid(logit).squeeze(1))


# ----------------------------------------------------------------------------
# Pure-JAX reference (faithful, unfused module math) for correctness check.
# ----------------------------------------------------------------------------
def reference_forward(params, contextual_rep, lm_log_probs, knn_dist, mask,
                      optimize_beta=False):
    mask_np = np.asarray(mask).reshape(-1)
    idx = np.nonzero(mask_np)[0]
    flat = mask_np.size
    x = jnp.asarray(contextual_rep).reshape(flat, -1)[idx]
    logp = jnp.asarray(lm_log_probs).reshape(flat, -1)[idx]
    knn = jnp.asarray(knn_dist)

    p = jnp.exp(logp)
    max_conf = jnp.max(p, axis=1, keepdims=True)
    entropy = jnp.sum(p * logp, axis=1, keepdims=True)

    ctx_e = x @ params["w_ctx"] + params["b_ctx"]
    conf_e = max_conf @ params["w_conf"] + params["b_conf"]
    ent_e = entropy @ params["w_conf"] + params["b_conf"]
    knn_e = knn @ params["w_knn"] + params["b_knn"]
    h = jnp.concatenate([ctx_e, conf_e, ent_e, knn_e], axis=1)
    h = jnp.maximum(h @ params["w1"] + params["b1"], 0.0)
    h = jnp.maximum(h @ params["w2"] + params["b2"], 0.0)
    h = jnp.maximum(h @ params["w3"] + params["b3"], 0.0)
    logit = h @ params["w4"] + params["b4"]
    if optimize_beta:
        return 1.0 + logit
    return jax.nn.sigmoid(logit)[:, 0]


if __name__ == "__main__":
    # Small synthetic shapes consistent with the module, chosen so the grid has
    # multiple tiles on BOTH axes and both vocab-mask code paths are exercised:
    #   batch B=2, seq T=144 (flat=288 -> 2 token tiles), model_dim D=64,
    #   vocab V=640, hidden_dim = projection_size = 32 (MLP input = 4*32 = 128).
    B, T, D, V, H = 2, 144, 64, 640, 32

    key = jax.random.PRNGKey(0)
    k_x, k_lp, k_knn, k_mask, k_par = jax.random.split(key, 5)

    contextual_rep = jax.random.normal(k_x, (B, T, D), jnp.float32)
    lm_log_probs = jax.nn.log_softmax(
        jax.random.normal(k_lp, (B, T, V), jnp.float32), axis=-1)

    mask = jax.random.uniform(k_mask, (B, T)) > 0.4
    mask = mask.at[0, 0].set(True)  # guarantee at least one valid token
    n_valid = int(np.asarray(mask).sum())

    knn_dist = jax.random.uniform(k_knn, (n_valid, 10), jnp.float32) * 5.0

    params = init_params(k_par, model_dim=D, hidden_dim=H, projection_size=H)
    fused = prepare_kernel_params(params, model_dim=D, hidden_dim=H)

    # Tolerances: remaining differences come from fused-weight reassociation,
    # chunked (streamed) reductions, and MXU vs XLA f32 matmul pass counts.
    RTOL, ATOL = 1e-2, 1e-2

    # 1) optimize_beta=False; tile_v=256 does NOT divide V=640 -> exercises the
    #    in-kernel iota column mask on the last (partial) vocab tile.
    out = lambda_network_forward(fused, contextual_rep, lm_log_probs,
                                 knn_dist, mask, optimize_beta=False,
                                 tile_n=256, tile_v=256)
    out = jax.block_until_ready(out)
    ref = reference_forward(params, contextual_rep, lm_log_probs,
                            knn_dist, mask, optimize_beta=False)
    np.testing.assert_allclose(np.asarray(out), np.asarray(ref),
                               rtol=RTOL, atol=ATOL)
    assert out.shape == (n_valid,)

    # 2) optimize_beta=True; tile_v=128 divides V=640 -> unmasked fast path.
    out_beta = lambda_network_forward(fused, contextual_rep, lm_log_probs,
                                      knn_dist, mask, optimize_beta=True,
                                      tile_n=256, tile_v=128)
    out_beta = jax.block_until_ready(out_beta)
    ref_beta = reference_forward(params, contextual_rep, lm_log_probs,
                                 knn_dist, mask, optimize_beta=True)
    np.testing.assert_allclose(np.asarray(out_beta), np.asarray(ref_beta),
                               rtol=RTOL, atol=ATOL)
    assert out_beta.shape == (n_valid, 1)

    # 3) bf16-exp inner loop (the v6e/v7x recommendation); f32 accumulation
    #    keeps the entropy sum accurate -> looser but still tight tolerance.
    out_b16 = lambda_network_forward(fused, contextual_rep, lm_log_probs,
                                     knn_dist, mask, optimize_beta=False,
                                     tile_n=256, tile_v=256, exp_in_bf16=True)
    out_b16 = jax.block_until_ready(out_b16)
    np.testing.assert_allclose(np.asarray(out_b16), np.asarray(ref),
                               rtol=5e-2, atol=5e-2)

    print("KERNEL_OK")
</pallas_src>

<mosaic_0001>
module attributes {stable_mosaic.version = 11 : i64} {
  func.func @_lambda_net_kernel(%arg0: i32, %arg1: i32, %arg2: memref<144x256xf32, #tpu.memory_space<vmem>>, %arg3: memref<144x128xf32, #tpu.memory_space<vmem>>, %arg4: memref<128x32xf32, #tpu.memory_space<vmem>>, %arg5: memref<64x32xf32, #tpu.memory_space<vmem>>, %arg6: memref<8x32xf32, #tpu.memory_space<vmem>>, %arg7: memref<144x1xf32, #tpu.memory_space<vmem>>, %arg8: memref<144x128xf32, #tpu.memory_space<vmem>>, %arg9: memref<144x128xf32, #tpu.memory_space<vmem>>) attributes {dimension_semantics = [#tpu.dimension_semantics<parallel>, #tpu.dimension_semantics<arbitrary>], iteration_bounds = array<i64: 2, 3>, scalar_prefetch = 0 : i64, scratch_operands = 2 : i64, tpu.core_type = #tpu.core_type<tc>, window_params = [{transform_indices = @transform_0, window_bounds = array<i64: 144, 256>}, {transform_indices = @transform_1, window_bounds = array<i64: 144, 128>}, {pipeline_mode = #tpu.pipeline_mode<synchronous>, transform_indices = @transform_2, window_bounds = array<i64: 128, 32>}, {pipeline_mode = #tpu.pipeline_mode<synchronous>, transform_indices = @transform_3, window_bounds = array<i64: 64, 32>}, {pipeline_mode = #tpu.pipeline_mode<synchronous>, transform_indices = @transform_4, window_bounds = array<i64: 8, 32>}, {transform_indices = @transform_5, window_bounds = array<i64: 144, 1>}]} {
    %c0_i32 = arith.constant 0 : i32
    %0 = arith.cmpi eq, %arg1, %c0_i32 : i32
    %1 = arith.extui %0 : i1 to i32
    %c0_i32_0 = arith.constant 0 : i32
    %2 = arith.cmpi ne, %1, %c0_i32_0 : i32
    scf.if %2 {
      %cst = arith.constant -1.000000e+09 : f32
      %12 = vector.broadcast %cst : f32 to vector<144x128xf32>
      %c0 = arith.constant 0 : index
      %c0_6 = arith.constant 0 : index
      %13 = vector.load %arg8[%c0, %c0_6] : memref<144x128xf32, #tpu.memory_space<vmem>>, vector<144x128xf32>
      tpu.vector_store %arg8[%c0, %c0_6], %12 {strides = array<i32>} : memref<144x128xf32, #tpu.memory_space<vmem>>, vector<144x128xf32>,
      %cst_7 = arith.constant 0.000000e+00 : f32
      %14 = vector.broadcast %cst_7 : f32 to vector<144x128xf32>
      %c0_8 = arith.constant 0 : index
      %c0_9 = arith.constant 0 : index
      %15 = vector.load %arg9[%c0_8, %c0_9] : memref<144x128xf32, #tpu.memory_space<vmem>>, vector<144x128xf32>
      tpu.vector_store %arg9[%c0_8, %c0_9], %14 {strides = array<i32>} : memref<144x128xf32, #tpu.memory_space<vmem>>, vector<144x128xf32>,
    } else {
    }
    %c2_i32 = arith.constant 2 : i32
    %3 = arith.cmpi ne, %arg1, %c2_i32 : i32
    %4 = arith.extui %3 : i1 to i32
    %c0_i32_1 = arith.constant 0 : i32
    %5 = arith.cmpi ne, %4, %c0_i32_1 : i32
    scf.if %5 {
      %c0 = arith.constant 0 : index
      %c0_6 = arith.constant 0 : index
      %12 = vector.load %arg2[%c0, %c0_6] : memref<144x256xf32, #tpu.memory_space<vmem>>, vector<144x128xf32>
      %c0_7 = arith.constant 0 : index
      %c0_8 = arith.constant 0 : index
      %13 = vector.load %arg8[%c0_7, %c0_8] : memref<144x128xf32, #tpu.memory_space<vmem>>, vector<144x128xf32>
      %14 = arith.maximumf %13, %12 : vector<144x128xf32>
      %c0_9 = arith.constant 0 : index
      %c0_10 = arith.constant 0 : index
      %15 = vector.load %arg8[%c0_9, %c0_10] : memref<144x128xf32, #tpu.memory_space<vmem>>, vector<144x128xf32>
      tpu.vector_store %arg8[%c0_9, %c0_10], %14 {strides = array<i32>} : memref<144x128xf32, #tpu.memory_space<vmem>>, vector<144x128xf32>,
      %16 = math.exp %12 : vector<144x128xf32>
      %17 = arith.mulf %16, %12 : vector<144x128xf32>
      %c0_11 = arith.constant 0 : index
      %c0_12 = arith.constant 0 : index
      %18 = vector.load %arg9[%c0_11, %c0_12] : memref<144x128xf32, #tpu.memory_space<vmem>>, vector<144x128xf32>
      %19 = arith.addf %18, %17 : vector<144x128xf32>
      %c0_13 = arith.constant 0 : index
      %c0_14 = arith.constant 0 : index
      %20 = vector.load %arg9[%c0_13, %c0_14] : memref<144x128xf32, #tpu.memory_space<vmem>>, vector<144x128xf32>
      tpu.vector_store %arg9[%c0_13, %c0_14], %19 {strides = array<i32>} : memref<144x128xf32, #tpu.memory_space<vmem>>, vector<144x128xf32>,
      %c0_15 = arith.constant 0 : index
      %c128 = arith.constant 128 : index
      %21 = vector.load %arg2[%c0_15, %c128] : memref<144x256xf32, #tpu.memory_space<vmem>>, vector<144x128xf32>
      %c0_16 = arith.constant 0 : index
      %c0_17 = arith.constant 0 : index
      %22 = vector.load %arg8[%c0_16, %c0_17] : memref<144x128xf32, #tpu.memory_space<vmem>>, vector<144x128xf32>
      %23 = arith.maximumf %22, %21 : vector<144x128xf32>
      %c0_18 = arith.constant 0 : index
      %c0_19 = arith.constant 0 : index
      %24 = vector.load %arg8[%c0_18, %c0_19] : memref<144x128xf32, #tpu.memory_space<vmem>>, vector<144x128xf32>
      tpu.vector_store %arg8[%c0_18, %c0_19], %23 {strides = array<i32>} : memref<144x128xf32, #tpu.memory_space<vmem>>, vector<144x128xf32>,
      %25 = math.exp %21 : vector<144x128xf32>
      %26 = arith.mulf %25, %21 : vector<144x128xf32>
      %c0_20 = arith.constant 0 : index
      %c0_21 = arith.constant 0 : index
      %27 = vector.load %arg9[%c0_20, %c0_21] : memref<144x128xf32, #tpu.memory_space<vmem>>, vector<144x128xf32>
      %28 = arith.addf %27, %26 : vector<144x128xf32>
      %c0_22 = arith.constant 0 : index
      %c0_23 = arith.constant 0 : index
      %29 = vector.load %arg9[%c0_22, %c0_23] : memref<144x128xf32, #tpu.memory_space<vmem>>, vector<144x128xf32>
      tpu.vector_store %arg9[%c0_22, %c0_23], %28 {strides = array<i32>} : memref<144x128xf32, #tpu.memory_space<vmem>>, vector<144x128xf32>,
    } else {
    }
    %c2_i32_2 = arith.constant 2 : i32
    %6 = arith.cmpi eq, %arg1, %c2_i32_2 : i32
    %7 = arith.extui %6 : i1 to i32
    %c0_i32_3 = arith.constant 0 : i32
    %8 = arith.cmpi ne, %7, %c0_i32_3 : i32
    scf.if %8 {
      %c0 = arith.constant 0 : index
      %c0_6 = arith.constant 0 : index
      %12 = vector.load %arg2[%c0, %c0_6] : memref<144x256xf32, #tpu.memory_space<vmem>>, vector<144x128xf32>
      %13 = tpu.iota {dimensions = array<i32: 1>} : vector<144x128xi32>
      %c256_i32 = arith.constant 256 : i32
      %14 = arith.muli %arg1, %c256_i32 : i32
      %c0_i32_7 = arith.constant 0 : i32
      %15 = arith.addi %14, %c0_i32_7 : i32
      %16 = vector.broadcast %15 : i32 to vector<144x128xi32>
      %17 = arith.addi %13, %16 : vector<144x128xi32>
      %c640_i32 = arith.constant 640 : i32
      %18 = vector.broadcast %c640_i32 : i32 to vector<144x128xi32>
      %19 = arith.cmpi slt, %17, %18 : vector<144x128xi32>
      %cst = arith.constant -1.000000e+09 : f32
      %20 = vector.broadcast %cst : f32 to vector<144x128xf32>
      %21 = arith.select %19, %12, %20 : vector<144x128xi1>, vector<144x128xf32>
      %c0_8 = arith.constant 0 : index
      %c0_9 = arith.constant 0 : index
      %22 = vector.load %arg8[%c0_8, %c0_9] : memref<144x128xf32, #tpu.memory_space<vmem>>, vector<144x128xf32>
      %23 = arith.maximumf %22, %21 : vector<144x128xf32>
      %c0_10 = arith.constant 0 : index
      %c0_11 = arith.constant 0 : index
      %24 = vector.load %arg8[%c0_10, %c0_11] : memref<144x128xf32, #tpu.memory_space<vmem>>, vector<144x128xf32>
      tpu.vector_store %arg8[%c0_10, %c0_11], %23 {strides = array<i32>} : memref<144x128xf32, #tpu.memory_space<vmem>>, vector<144x128xf32>,
      %25 = math.exp %21 : vector<144x128xf32>
      %26 = arith.mulf %25, %21 : vector<144x128xf32>
      %c0_12 = arith.constant 0 : index
      %c0_13 = arith.constant 0 : index
      %27 = vector.load %arg9[%c0_12, %c0_13] : memref<144x128xf32, #tpu.memory_space<vmem>>, vector<144x128xf32>
      %28 = arith.addf %27, %26 : vector<144x128xf32>
      %c0_14 = arith.constant 0 : index
      %c0_15 = arith.constant 0 : index
      %29 = vector.load %arg9[%c0_14, %c0_15] : memref<144x128xf32, #tpu.memory_space<vmem>>, vector<144x128xf32>
      tpu.vector_store %arg9[%c0_14, %c0_15], %28 {strides = array<i32>} : memref<144x128xf32, #tpu.memory_space<vmem>>, vector<144x128xf32>,
      %c0_16 = arith.constant 0 : index
      %c128 = arith.constant 128 : index
      %30 = vector.load %arg2[%c0_16, %c128] : memref<144x256xf32, #tpu.memory_space<vmem>>, vector<144x128xf32>
      %31 = tpu.iota {dimensions = array<i32: 1>} : vector<144x128xi32>
      %c256_i32_17 = arith.constant 256 : i32
      %32 = arith.muli %arg1, %c256_i32_17 : i32
      %c128_i32 = arith.constant 128 : i32
      %33 = arith.addi %32, %c128_i32 : i32
      %34 = vector.broadcast %33 : i32 to vector<144x128xi32>
      %35 = arith.addi %31, %34 : vector<144x128xi32>
      %c640_i32_18 = arith.constant 640 : i32
      %36 = vector.broadcast %c640_i32_18 : i32 to vector<144x128xi32>
      %37 = arith.cmpi slt, %35, %36 : vector<144x128xi32>
      %cst_19 = arith.constant -1.000000e+09 : f32
      %38 = vector.broadcast %cst_19 : f32 to vector<144x128xf32>
      %39 = arith.select %37, %30, %38 : vector<144x128xi1>, vector<144x128xf32>
      %c0_20 = arith.constant 0 : index
      %c0_21 = arith.constant 0 : index
      %40 = vector.load %arg8[%c0_20, %c0_21] : memref<144x128xf32, #tpu.memory_space<vmem>>, vector<144x128xf32>
      %41 = arith.maximumf %40, %39 : vector<144x128xf32>
      %c0_22 = arith.constant 0 : index
      %c0_23 = arith.constant 0 : index
      %42 = vector.load %arg8[%c0_22, %c0_23] : memref<144x128xf32, #tpu.memory_space<vmem>>, vector<144x128xf32>
      tpu.vector_store %arg8[%c0_22, %c0_23], %41 {strides = array<i32>} : memref<144x128xf32, #tpu.memory_space<vmem>>, vector<144x128xf32>,
      %43 = math.exp %39 : vector<144x128xf32>
      %44 = arith.mulf %43, %39 : vector<144x128xf32>
      %c0_24 = arith.constant 0 : index
      %c0_25 = arith.constant 0 : index
      %45 = vector.load %arg9[%c0_24, %c0_25] : memref<144x128xf32, #tpu.memory_space<vmem>>, vector<144x128xf32>
      %46 = arith.addf %45, %44 : vector<144x128xf32>
      %c0_26 = arith.constant 0 : index
      %c0_27 = arith.constant 0 : index
      %47 = vector.load %arg9[%c0_26, %c0_27] : memref<144x128xf32, #tpu.memory_space<vmem>>, vector<144x128xf32>
      tpu.vector_store %arg9[%c0_26, %c0_27], %46 {strides = array<i32>} : memref<144x128xf32, #tpu.memory_space<vmem>>, vector<144x128xf32>,
    } else {
    }
    %c2_i32_4 = arith.constant 2 : i32
    %9 = arith.cmpi eq, %arg1, %c2_i32_4 : i32
    %10 = arith.extui %9 : i1 to i32
    %c0_i32_5 = arith.constant 0 : i32
    %11 = arith.cmpi ne, %10, %c0_i32_5 : i32
    scf.if %11 {
      %c0 = arith.constant 0 : index
      %c0_6 = arith.constant 0 : index
      %12 = vector.load %arg8[%c0, %c0_6] : memref<144x128xf32, #tpu.memory_space<vmem>>, vector<144x128xf32>
      %cst = arith.constant dense<0xFF800000> : vector<144xf32>
      %13 = vector.multi_reduction <maximumf>, %12, %cst [1] : vector<144x128xf32> to vector<144xf32>
      %14 = vector.shape_cast %13 : vector<144xf32> to vector<144x1xf32>
      %15 = math.exp %14 : vector<144x1xf32>
      %c0_7 = arith.constant 0 : index
      %c0_8 = arith.constant 0 : index
      %16 = vector.load %arg9[%c0_7, %c0_8] : memref<144x128xf32, #tpu.memory_space<vmem>>, vector<144x128xf32>
      %cst_9 = arith.constant dense<0.000000e+00> : vector<144xf32>
      %17 = vector.multi_reduction <add>, %16, %cst_9 [1] : vector<144x128xf32> to vector<144xf32>
      %18 = vector.shape_cast %17 : vector<144xf32> to vector<144x1xf32>
      %c0_10 = arith.constant 0 : index
      %c0_11 = arith.constant 0 : index
      %19 = vector.load %arg6[%c0_10, %c0_11] : memref<8x32xf32, #tpu.memory_space<vmem>>, vector<8x32xf32>
      %20 = vector.extract_strided_slice %19 {offsets = [0, 0], sizes = [1, 32], strides = [1, 1]} : vector<8x32xf32> to vector<1x32xf32>
      %21 = vector.extract_strided_slice %19 {offsets = [1, 0], sizes = [1, 32], strides = [1, 1]} : vector<8x32xf32> to vector<1x32xf32>
      %22 = vector.extract_strided_slice %19 {offsets = [2, 0], sizes = [1, 32], strides = [1, 1]} : vector<8x32xf32> to vector<1x32xf32>
      %23 = vector.extract_strided_slice %19 {offsets = [3, 0], sizes = [1, 32], strides = [1, 1]} : vector<8x32xf32> to vector<1x32xf32>
      %24 = vector.extract_strided_slice %19 {offsets = [4, 0], sizes = [1, 32], strides = [1, 1]} : vector<8x32xf32> to vector<1x32xf32>
      %25 = vector.extract_strided_slice %19 {offsets = [5, 0], sizes = [1, 32], strides = [1, 1]} : vector<8x32xf32> to vector<1x32xf32>
      %26 = vector.extract_strided_slice %19 {offsets = [6, 0], sizes = [1, 1], strides = [1, 1]} : vector<8x32xf32> to vector<1x1xf32>
      %c0_12 = arith.constant 0 : index
      %c0_13 = arith.constant 0 : index
      %27 = vector.load %arg3[%c0_12, %c0_13] : memref<144x128xf32, #tpu.memory_space<vmem>>, vector<144x128xf32>
      %c0_14 = arith.constant 0 : index
      %c0_15 = arith.constant 0 : index
      %28 = vector.load %arg4[%c0_14, %c0_15] : memref<128x32xf32, #tpu.memory_space<vmem>>, vector<128x32xf32>
      %cst_16 = arith.constant dense<0.000000e+00> : vector<144x32xf32>
      %29 = tpu.matmul %27, %28, %cst_16 {dimension_numbers = #tpu.dot_dimension_numbers<[1], [0], [0], [1], [0, 0, 1, 1], [], []>} : vector<144x128xf32>, vector<128x32xf32>, vector<144x32xf32> -> vector<144x32xf32>
      %30 = vector.broadcast %15 : vector<144x1xf32> to vector<144x32xf32>
      %31 = vector.broadcast %20 : vector<1x32xf32> to vector<144x32xf32>
      %32 = arith.mulf %30, %31 : vector<144x32xf32>
      %33 = arith.addf %29, %32 : vector<144x32xf32>
      %34 = vector.broadcast %18 : vector<144x1xf32> to vector<144x32xf32>
      %35 = vector.broadcast %21 : vector<1x32xf32> to vector<144x32xf32>
      %36 = arith.mulf %34, %35 : vector<144x32xf32>
      %37 = arith.addf %33, %36 : vector<144x32xf32>
      %38 = vector.broadcast %22 : vector<1x32xf32> to vector<144x32xf32>
      %39 = arith.addf %37, %38 : vector<144x32xf32>
      %cst_17 = arith.constant 0.000000e+00 : f32
      %40 = vector.broadcast %cst_17 : f32 to vector<144x32xf32>
      %41 = arith.maximumf %39, %40 : vector<144x32xf32>
      %c0_18 = arith.constant 0 : index
      %c0_19 = arith.constant 0 : index
      %42 = vector.load %arg5[%c0_18, %c0_19] : memref<64x32xf32, #tpu.memory_space<vmem>>, vector<32x32xf32>
      %cst_20 = arith.constant dense<0.000000e+00> : vector<144x32xf32>
      %43 = tpu.matmul %41, %42, %cst_20 {dimension_numbers = #tpu.dot_dimension_numbers<[1], [0], [0], [1], [0, 0, 1, 1], [], []>} : vector<144x32xf32>, vector<32x32xf32>, vector<144x32xf32> -> vector<144x32xf32>
      %44 = vector.broadcast %23 : vector<1x32xf32> to vector<144x32xf32>
      %45 = arith.addf %43, %44 : vector<144x32xf32>
      %cst_21 = arith.constant 0.000000e+00 : f32
      %46 = vector.broadcast %cst_21 : f32 to vector<144x32xf32>
      %47 = arith.maximumf %45, %46 : vector<144x32xf32>
      %c32 = arith.constant 32 : index
      %c0_22 = arith.constant 0 : index
      %48 = vector.load %arg5[%c32, %c0_22] : memref<64x32xf32, #tpu.memory_space<vmem>>, vector<32x32xf32>
      %cst_23 = arith.constant dense<0.000000e+00> : vector<144x32xf32>
      %49 = tpu.matmul %47, %48, %cst_23 {dimension_numbers = #tpu.dot_dimension_numbers<[1], [0], [0], [1], [0, 0, 1, 1], [], []>} : vector<144x32xf32>, vector<32x32xf32>, vector<144x32xf32> -> vector<144x32xf32>
      %50 = vector.broadcast %24 : vector<1x32xf32> to vector<144x32xf32>
      %51 = arith.addf %49, %50 : vector<144x32xf32>
      %cst_24 = arith.constant 0.000000e+00 : f32
      %52 = vector.broadcast %cst_24 : f32 to vector<144x32xf32>
      %53 = arith.maximumf %51, %52 : vector<144x32xf32>
      %54 = vector.broadcast %25 : vector<1x32xf32> to vector<144x32xf32>
      %55 = arith.mulf %53, %54 : vector<144x32xf32>
      %cst_25 = arith.constant dense<0.000000e+00> : vector<144xf32>
      %56 = vector.multi_reduction <add>, %55, %cst_25 [1] : vector<144x32xf32> to vector<144xf32>
      %57 = vector.shape_cast %56 : vector<144xf32> to vector<144x1xf32>
      %58 = vector.broadcast %26 : vector<1x1xf32> to vector<144x1xf32>
      %59 = arith.addf %57, %58 : vector<144x1xf32>
      %60 = arith.negf %59 : vector<144x1xf32>
      %61 = math.exp %60 : vector<144x1xf32>
      %cst_26 = arith.constant 1.000000e+00 : f32
      %62 = vector.broadcast %cst_26 : f32 to vector<144x1xf32>
      %63 = arith.addf %62, %61 : vector<144x1xf32>
      %64 = arith.divf %62, %63 : vector<144x1xf32>
      %c0_27 = arith.constant 0 : index
      %c0_28 = arith.constant 0 : index
      %65 = vector.load %arg7[%c0_27, %c0_28] : memref<144x1xf32, #tpu.memory_space<vmem>>, vector<144x1xf32>
      tpu.vector_store %arg7[%c0_27, %c0_28], %64 {strides = array<i32>} : memref<144x1xf32, #tpu.memory_space<vmem>>, vector<144x1xf32>,
    } else {
    }
    return
  }
  func.func @transform_0(%arg0: i32, %arg1: i32) -> (i32, i32) {
    %c0_i32 = arith.constant 0 : i32
    return %arg0, %arg1 : i32, i32
  }
  func.func @transform_1(%arg0: i32, %arg1: i32) -> (i32, i32) {
    %c0_i32 = arith.constant 0 : i32
    %c0_i32_0 = arith.constant 0 : i32
    return %arg0, %c0_i32 : i32, i32
  }
  func.func @transform_2(%arg0: i32, %arg1: i32) -> (i32, i32) {
    %c0_i32 = arith.constant 0 : i32
    %c0_i32_0 = arith.constant 0 : i32
    %c0_i32_1 = arith.constant 0 : i32
    return %c0_i32, %c0_i32_0 : i32, i32
  }
  func.func @transform_3(%arg0: i32, %arg1: i32) -> (i32, i32) {
    %c0_i32 = arith.constant 0 : i32
    %c0_i32_0 = arith.constant 0 : i32
    %c0_i32_1 = arith.constant 0 : i32
    return %c0_i32, %c0_i32_0 : i32, i32
  }
  func.func @transform_4(%arg0: i32, %arg1: i32) -> (i32, i32) {
    %c0_i32 = arith.constant 0 : i32
    %c0_i32_0 = arith.constant 0 : i32
    %c0_i32_1 = arith.constant 0 : i32
    return %c0_i32, %c0_i32_0 : i32, i32
  }
  func.func @transform_5(%arg0: i32, %arg1: i32) -> (i32, i32) {
    %c0_i32 = arith.constant 0 : i32
    %c0_i32_0 = arith.constant 0 : i32
    return %arg0, %c0_i32 : i32, i32
  }
}

</mosaic_0001>

<llo_original>
// kernel: tpu_custom_call.1
$region0: #{tpu_custom_call.1}
  #allocation0 [shape = 'u32[]', space=smem, size = 0x4, offset = 0x4, fixed_abs, tag = 'smem constant byte address 0x4 - core index']
  #allocation1 [shape = 'u32[72,128]{1,0:T(1,128)}', space=vmem, size = 0x9000, scoped, tag = 'internal scratch']
  #allocation2 [shape = 'f32[144,128]{1,0:T(8,128)}', space=vmem, size = 0x12000, scoped, tag = 'scratch operand']
  #allocation3 [shape = 'f32[144,128]{1,0:T(8,128)}', space=vmem, size = 0x12000, scoped, tag = 'scratch operand']
  %s0 = inlined_call_operand.hbm [shape: f32[288,640], index: 0, kind: input, shape index: {}]
  %s1 = inlined_call_operand.hbm [shape: f32[288,128], index: 1, kind: input, shape index: {}]
  %s2 = inlined_call_operand.vmem [shape: f32[128,32], index: 2, kind: input, shape index: {}]
  %s3 = inlined_call_operand.vmem [shape: f32[64,32], index: 3, kind: input, shape index: {}]
  %s4 = inlined_call_operand.vmem [shape: f32[8,32], index: 4, kind: input, shape index: {}]
  %s5 = inlined_call_operand.vmem [shape: f32[288,1], index: 5, kind: output, shape index: {}]
  %s6 = sld [smem:[#allocation0]]
  $region73: #{tpu_custom_call.1} parent=0
    _
  %s8 = ssub.s32 1, %s6
  %s9 = scalar_select 0, %s8, %s6
  $region1: #{tpu_custom_call.1} parent=0
    #allocation4 [shape = 'u8[294912]{0}', space=vmem, size = 0x48000, scoped, tag = 'input window, operand 0']
    #allocation5 [shape = 's32[2]{0}', space=sflag, size = 0x8, scoped, tag = 'scoped memory for tpu_custom_call.1']
    #allocation6 [shape = 'u8[147456]{0}', space=vmem, size = 0x24000, scoped, tag = 'input window, operand 1']
    #allocation7 [shape = 's32[2]{0}', space=sflag, size = 0x8, scoped, tag = 'scoped memory for tpu_custom_call.1']
    %10 = vsyncpa [#allocation5], 0
    %s11 = scalar_lea.sflag [#allocation5], 1
    %12 = vsyncpa %s11, 0
    %13 = vsyncpa [#allocation7], 0
    %s14 = scalar_lea.sflag [#allocation7], 1
    %15 = vsyncpa %s14, 0
    loop: start=0, step=1, limit=8
    $region2: #{tpu_custom_call.1} parent=1 // loop_pre_header
      _
    $region3: #{tpu_custom_call.1} parent=1 // loop_header
      %s17 = sphi 0, %s21
      %p18 = scmp.ge.s32.totalorder %s17, 8
      %s24 = sphi 0, %s36
      %s25 = sphi 0, %s32
      %s26 = sphi 0, %s24
      %s27 = sphi 0, %s25
      %s28 = sphi 0, %s26
      %s29 = sphi 0, %s27
      %s41 = sphi 0, %s43
      %s44 = sphi 0, %s41
      %s45 = sphi 0, %s44
      %s61 = sphi 0, %s45
      %s67 = sphi 0, %s69
      %s70 = sphi 0, %s67
      %s71 = sphi 0, %s70
      %s87 = sphi 0, %s71
      %s91 = sphi 0, %s91
      %s93 = sphi 0, %s91
      %s94 = sphi 0, %s93
      %s108 = sphi 0, %s94
      %s112 = sphi 0, %s112
      %s114 = sphi 0, %s112
      %s115 = sphi 0, %s114
      %s129 = sphi 0, %s115
      %s133 = sphi 0, %s133
      %s135 = sphi 0, %s133
      %s136 = sphi 0, %s135
      %s150 = sphi 0, %s136
      %s156 = sphi 0, %s158
      %s159 = sphi 0, %s156
      %s160 = sphi 0, %s159
      %s176 = sphi 0, %s160
    $region4: #{tpu_custom_call.1} parent=1 // loop_header_branch
      %20 = sbr.rel (%p18) target = $region8
    $region5: #{tpu_custom_call.1} parent=1 // loop_body
      %s22 = ssub.s32 %s17, 1
      %s23 = ssub.s32 %s17, 2
      %s30 = sadd.s32 1, %s25
      %p31 = scmp.ge.s32.totalorder %s30, 3
      %s32 = scalar_select %p31, 0, %s30
      %s33 = sadd.s32 1, %s24
      %s34 = scalar_select %p31, %s33, %s24
      %p35 = scmp.ge.s32.totalorder %s34, 2
      %s36 = scalar_select %p35, 0, %s34
      %s37 = ssub.s32 %s24, %s36
      %s38 = ssub.s32 %s25, %s32
      %s39 = sor.u32 %s37, %s38
      %p40 = scmp.eq.s32.totalorder %s39, 0
      %s42 = sadd.s32 %s41, 1
      %s43 = scalar_select %p40, %s41, %s42
      %p46 = pneg %p40
      %p47 = scmp.eq.s32.totalorder %s17, 5
      %p48 = por %p46, %p47
      %p49 = scmp.ne.s32.totalorder %s41, %s44
      %p50 = scmp.eq.s32.totalorder %s17, 0
      %p51 = por %p49, %p50
      %p52 = scmp.ne.s32.totalorder %s41, %s44
      %p53 = scmp.eq.s32.totalorder %s22, 5
      %p54 = por %p52, %p53
      %p55 = scmp.ne.s32.totalorder %s44, %s45
      %p56 = scmp.eq.s32.totalorder %s22, 0
      %p57 = por %p55, %p56
      %p58 = scmp.ne.s32.totalorder %s44, %s45
      %p59 = scmp.eq.s32.totalorder %s23, 5
      %p60 = por %p58, %p59
      %p62 = scmp.ne.s32.totalorder %s45, %s61
      %p63 = scmp.eq.s32.totalorder %s23, 0
      %p64 = por %p62, %p63
      %s65 = ssub.s32 %s24, %s36
      %p66 = scmp.eq.s32.totalorder %s65, 0
      %s68 = sadd.s32 %s67, 1
      %s69 = scalar_select %p66, %s67, %s68
      %p72 = pneg %p66
      %p73 = scmp.eq.s32.totalorder %s17, 5
      %p74 = por %p72, %p73
      %p75 = scmp.ne.s32.totalorder %s67, %s70
      %p76 = scmp.eq.s32.totalorder %s17, 0
      %p77 = por %p75, %p76
      %p78 = scmp.ne.s32.totalorder %s67, %s70
      %p79 = scmp.eq.s32.totalorder %s22, 5
      %p80 = por %p78, %p79
      %p81 = scmp.ne.s32.totalorder %s70, %s71
      %p82 = scmp.eq.s32.totalorder %s22, 0
      %p83 = por %p81, %p82
      %p84 = scmp.ne.s32.totalorder %s70, %s71
      %p85 = scmp.eq.s32.totalorder %s23, 5
      %p86 = por %p84, %p85
      %p88 = scmp.ne.s32.totalorder %s71, %s87
      %p89 = scmp.eq.s32.totalorder %s23, 0
      %p90 = por %p88, %p89
      %s92 = sadd.s32 %s91, 1
      %p95 = scmp.eq.s32.totalorder %s17, 5
      %p96 = scmp.ne.s32.totalorder %s91, %s93
      %p97 = scmp.eq.s32.totalorder %s17, 0
      %p98 = por %p96, %p97
      %p99 = scmp.ne.s32.totalorder %s91, %s93
      %p100 = scmp.eq.s32.totalorder %s22, 5
      %p101 = por %p99, %p100
      %p102 = scmp.ne.s32.totalorder %s93, %s94
      %p103 = scmp.eq.s32.totalorder %s22, 0
      %p104 = por %p102, %p103
      %p105 = scmp.ne.s32.totalorder %s93, %s94
      %p106 = scmp.eq.s32.totalorder %s23, 5
      %p107 = por %p105, %p106
      %p109 = scmp.ne.s32.totalorder %s94, %s108
      %p110 = scmp.eq.s32.totalorder %s23, 0
      %p111 = por %p109, %p110
      %s113 = sadd.s32 %s112, 1
      %p116 = scmp.eq.s32.totalorder %s17, 5
      %p117 = scmp.ne.s32.totalorder %s112, %s114
      %p118 = scmp.eq.s32.totalorder %s17, 0
      %p119 = por %p117, %p118
      %p120 = scmp.ne.s32.totalorder %s112, %s114
      %p121 = scmp.eq.s32.totalorder %s22, 5
      %p122 = por %p120, %p121
      %p123 = scmp.ne.s32.totalorder %s114, %s115
      %p124 = scmp.eq.s32.totalorder %s22, 0
      %p125 = por %p123, %p124
      %p126 = scmp.ne.s32.totalorder %s114, %s115
      %p127 = scmp.eq.s32.totalorder %s23, 5
      %p128 = por %p126, %p127
      %p130 = scmp.ne.s32.totalorder %s115, %s129
      %p131 = scmp.eq.s32.totalorder %s23, 0
      %p132 = por %p130, %p131
      %s134 = sadd.s32 %s133, 1
      %p137 = scmp.eq.s32.totalorder %s17, 5
      %p138 = scmp.ne.s32.totalorder %s133, %s135
      %p139 = scmp.eq.s32.totalorder %s17, 0
      %p140 = por %p138, %p139
      %p141 = scmp.ne.s32.totalorder %s133, %s135
      %p142 = scmp.eq.s32.totalorder %s22, 5
      %p143 = por %p141, %p142
      %p144 = scmp.ne.s32.totalorder %s135, %s136
      %p145 = scmp.eq.s32.totalorder %s22, 0
      %p146 = por %p144, %p145
      %p147 = scmp.ne.s32.totalorder %s135, %s136
      %p148 = scmp.eq.s32.totalorder %s23, 5
      %p149 = por %p147, %p148
      %p151 = scmp.ne.s32.totalorder %s136, %s150
      %p152 = scmp.eq.s32.totalorder %s23, 0
      %p153 = por %p151, %p152
      %s154 = ssub.s32 %s24, %s36
      %p155 = scmp.eq.s32.totalorder %s154, 0
      %s157 = sadd.s32 %s156, 1
      %s158 = scalar_select %p155, %s156, %s157
      %p161 = pneg %p155
      %p162 = scmp.eq.s32.totalorder %s17, 5
      %p163 = por %p161, %p162
      %p164 = scmp.ne.s32.totalorder %s156, %s159
      %p165 = scmp.eq.s32.totalorder %s17, 0
      %p166 = por %p164, %p165
      %p167 = scmp.ne.s32.totalorder %s156, %s159
      %p168 = scmp.eq.s32.totalorder %s22, 5
      %p169 = por %p167, %p168
      %p170 = scmp.ne.s32.totalorder %s159, %s160
      %p171 = scmp.eq.s32.totalorder %s22, 0
      %p172 = por %p170, %p171
      %p173 = scmp.ne.s32.totalorder %s159, %s160
      %p174 = scmp.eq.s32.totalorder %s23, 5
      %p175 = por %p173, %p174
      %p177 = scmp.ne.s32.totalorder %s160, %s176
      %p178 = scmp.eq.s32.totalorder %s23, 0
      %p179 = por %p177, %p178
      %p180 = scmp.le.s32.totalorder 1, %s17
      %p181 = scmp.lt.s32.totalorder %s17, 7
      %p182 = pnand %p180, %p181
      %p183 = pneg %p182
      // Predicated region
      $region9: #{tpu_custom_call.1} parent=5 // pred_check
        _
      $region10: #{tpu_custom_call.1} parent=5 // pred_check_branch
        %185 = sbr.rel (%p182) target = $region12
      $region11: #{tpu_custom_call.1} parent=5 // pred_region
        %s186 = ssub.s32 %s17, 1
        // Predicated region
        $region13: #{tpu_custom_call.1} parent=11 // pred_check
          %p187 = pneg %p104
        $region14: #{tpu_custom_call.1} parent=11 // pred_check_branch
          %189 = sbr.rel (%p187) target = $region16
        $region15: #{tpu_custom_call.1} parent=11 // pred_region
          _
        $region16: #{tpu_custom_call.1} parent=11 // pred_fallthru
          _
        // Predicated region
        $region17: #{tpu_custom_call.1} parent=11 // pred_check
          %p190 = pneg %p125
        $region18: #{tpu_custom_call.1} parent=11 // pred_check_branch
          %192 = sbr.rel (%p190) target = $region20
        $region19: #{tpu_custom_call.1} parent=11 // pred_region
          _
        $region20: #{tpu_custom_call.1} parent=11 // pred_fallthru
          _
        // Predicated region
        $region21: #{tpu_custom_call.1} parent=11 // pred_check
          %p193 = pneg %p146
        $region22: #{tpu_custom_call.1} parent=11 // pred_check_branch
          %195 = sbr.rel (%p193) target = $region24
        $region23: #{tpu_custom_call.1} parent=11 // pred_region
          _
        $region24: #{tpu_custom_call.1} parent=11 // pred_fallthru
          _
      $region12: #{tpu_custom_call.1} parent=5 // pred_fallthru
        _
      %p196 = scmp.lt.s32.totalorder %s17, 6
      // Predicated region
      $region25: #{tpu_custom_call.1} parent=5 // pred_check
        %p197 = pneg %p196
      $region26: #{tpu_custom_call.1} parent=5 // pred_check_branch
        %199 = sbr.rel (%p197) target = $region28
      $region27: #{tpu_custom_call.1} parent=5 // pred_region
        // Predicated region
        $region29: #{tpu_custom_call.1} parent=27 // pred_check
          %p200 = pneg %p51
        $region30: #{tpu_custom_call.1} parent=27 // pred_check_branch
          %202 = sbr.rel (%p200) target = $region32
        $region31: #{tpu_custom_call.1} parent=27 // pred_region
          %s203 = sand.u32 %s41, 1
          %s204 = scalar_lea.sflag [#allocation5], %s203
          %s205 = sand.u32 %s41, 1
          %s206 = smul.addr %s205, 288
          %s207 = scalar_lea.vmem [#allocation4], %s206
          %s208 = smul.u32 18, %s24
          %s209 = smul.u32 2, %s25
          %s210 = ssub.s32 5, %s209
          %p211 = scmp.lt.s32.totalorder %s210, 2
          %s212 = scalar_select %p211, %s210, 2
          %s213 = smul.u32 144, %s212
          %s214 = ssub.s32 288, %s213
          %s215 = sshll.u32 %s214, 4
          %216 = vsyncadd %s204, %s215
          %p217 = scmp.ne.s32.totalorder 0, %s213
          %s218 = smul.addr %s208, 5
          %s219 = sadd.s32 %s209, %s218
          %s220 = smul.addr %s219, 8
          %s221 = scalar_lea.hbm %s0, %s220
          %s222 = smul.u32 %s212, 8
          %s223 = smul.u32 %s222, 18
          %s224 = sshll.u32 %s221, 4
          %s225 = int_to_ptr.hbm [resolvable:$true] %s224
          %s226 = sshll.u32 %s207, 4
          %s227 = int_to_ptr.vmem [resolvable:$true] %s226
          %s228 = sshll.u32 %s223, 4
          %232 = dma.hbm_to_vmem [thread:$0]  (%p217), %s225, %s228, %s227, %s204, 640, 256, %s222
        $region32: #{tpu_custom_call.1} parent=27 // pred_fallthru
          _
        // Predicated region
        $region33: #{tpu_custom_call.1} parent=27 // pred_check
          %p233 = pneg %p77
        $region34: #{tpu_custom_call.1} parent=27 // pred_check_branch
          %235 = sbr.rel (%p233) target = $region36
        $region35: #{tpu_custom_call.1} parent=27 // pred_region
          %s236 = sand.u32 %s67, 1
          %s237 = scalar_lea.sflag [#allocation7], %s236
          %s238 = sand.u32 %s67, 1
          %s239 = smul.addr %s238, 144
          %s240 = scalar_lea.vmem [#allocation6], %s239
          %s241 = smul.u32 18, %s24
          %243 = vsyncadd %s237, 0
          %s244 = smul.addr %s241, 8
          %s245 = scalar_lea.hbm %s1, %s244
          %s246 = sshll.u32 %s245, 4
          %s247 = int_to_ptr.hbm [resolvable:$true] %s246
          %s248 = sshll.u32 %s240, 4
          %s249 = int_to_ptr.vmem [resolvable:$true] %s248
          %254 = dma.hbm_to_vmem [thread:$0]  %s247, 2304, %s249, %s237, 128, 128, 8
        $region36: #{tpu_custom_call.1} parent=27 // pred_fallthru
          _
      $region28: #{tpu_custom_call.1} parent=5 // pred_fallthru
        _
      %p255 = scmp.le.s32.totalorder 1, %s17
      %p256 = scmp.lt.s32.totalorder %s17, 7
      %p257 = pnand %p255, %p256
      %p258 = pneg %p257
      // Predicated region
      $region37: #{tpu_custom_call.1} parent=5 // pred_check
        _
      $region38: #{tpu_custom_call.1} parent=5 // pred_check_branch
        %260 = sbr.rel (%p257) target = $region40
      $region39: #{tpu_custom_call.1} parent=5 // pred_region
        %s261 = ssub.s32 %s17, 1
        %s262 = sand.u32 %s44, 1
        %s263 = scalar_lea.sflag [#allocation5], %s262
        %s264 = sand.u32 %s44, 1
        %s265 = smul.addr %s264, 288
        %s266 = scalar_lea.vmem [#allocation4], %s265
        // Predicated region
        $region41: #{tpu_custom_call.1} parent=39 // pred_check
          %p267 = pneg %p57
        $region42: #{tpu_custom_call.1} parent=39 // pred_check_branch
          %269 = sbr.rel (%p267) target = $region44
        $region43: #{tpu_custom_call.1} parent=39 // pred_region
          %271 = dma.done %s263, 4608
        $region44: #{tpu_custom_call.1} parent=39 // pred_fallthru
          _
        %s272 = sand.u32 %s70, 1
        %s273 = scalar_lea.sflag [#allocation7], %s272
        %s274 = sand.u32 %s70, 1
        %s275 = smul.addr %s274, 144
        %s276 = scalar_lea.vmem [#allocation6], %s275
        // Predicated region
        $region45: #{tpu_custom_call.1} parent=39 // pred_check
          %p277 = pneg %p83
        $region46: #{tpu_custom_call.1} parent=39 // pred_check_branch
          %279 = sbr.rel (%p277) target = $region48
        $region47: #{tpu_custom_call.1} parent=39 // pred_region
          %281 = dma.done %s273, 2304
        $region48: #{tpu_custom_call.1} parent=39 // pred_fallthru
          _
        %s282 = sand.u32 %s44, 1
        %s283 = scalar_lea.sflag [#allocation5], %s282
        %s284 = sand.u32 %s44, 1
        %s285 = smul.addr %s284, 288
        %s286 = scalar_lea.vmem [#allocation4], %s285
        %p287 = pneg %p57
        %p288 = pneg %p54
        %s289 = sand.u32 %s70, 1
        %s290 = scalar_lea.sflag [#allocation7], %s289
        %s291 = sand.u32 %s70, 1
        %s292 = smul.addr %s291, 144
        %s293 = scalar_lea.vmem [#allocation6], %s292
        %p294 = pneg %p83
        %p295 = pneg %p80
        %p296 = pneg %p104
        %p297 = pneg %p101
        %p298 = pneg %p125
        %p299 = pneg %p122
        %p300 = pneg %p146
        %p301 = pneg %p143
        %p302 = pneg %p172
        %p303 = pneg %p169
        %s304 = smul.u32 18, %s26
        %p305 = scmp.lt.s32.totalorder %s304, 35
        %s306 = scalar_select %p305, %s304, 35
        %s307 = smul.addr %s306, 8
        %s308 = scalar_lea.vmem %s5, %s307
        %s309 = smul.u32 18, %s26
        %s310 = smul.u32 2, %s27
        %s311 = ssub.s32 5, %s310
        %p312 = scmp.lt.s32.totalorder %s311, 2
        %s313 = scalar_select %p312, %s311, 2
        %s314 = smul.u32 144, %s313
        %s315 = smul.u32 18, %s26
        %s316 = smul.u32 18, %s26
        %p317 = scmp.lt.s32.totalorder %s316, 35
        %s318 = scalar_select %p317, %s316, 35
        %s319 = smul.addr %s318, 8
        %s320 = scalar_lea.vmem %s5, %s319
        %s321 = smul.u32 18, %s26
        %p322 = scmp.eq.s32.totalorder %s27, 0
        // Predicated region
        $region49: #{tpu_custom_call.1} parent=39 // pred_check
          %p323 = pneg %p322
        $region50: #{tpu_custom_call.1} parent=39 // pred_check_branch
          %325 = sbr.rel (%p323) target = $region52
        $region51: #{tpu_custom_call.1} parent=39 // pred_region
          %326 = vst [vmem:[#allocation2] sm:$0xff] -1e+09
          %327 = vst [vmem:[#allocation2 + $0x8] sm:$0xff] -1e+09
          %328 = vst [vmem:[#allocation2 + $0x10] sm:$0xff] -1e+09
          %329 = vst [vmem:[#allocation2 + $0x18] sm:$0xff] -1e+09
          %330 = vst [vmem:[#allocation2 + $0x20] sm:$0xff] -1e+09
          %331 = vst [vmem:[#allocation2 + $0x28] sm:$0xff] -1e+09
          %332 = vst [vmem:[#allocation2 + $0x30] sm:$0xff] -1e+09
          %333 = vst [vmem:[#allocation2 + $0x38] sm:$0xff] -1e+09
          %334 = vst [vmem:[#allocation2 + $0x40] sm:$0xff] -1e+09
          %335 = vst [vmem:[#allocation2 + $0x48] sm:$0xff] -1e+09
          %336 = vst [vmem:[#allocation2 + $0x50] sm:$0xff] -1e+09
          %337 = vst [vmem:[#allocation2 + $0x58] sm:$0xff] -1e+09
          %338 = vst [vmem:[#allocation2 + $0x60] sm:$0xff] -1e+09
          %339 = vst [vmem:[#allocation2 + $0x68] sm:$0xff] -1e+09
          %340 = vst [vmem:[#allocation2 + $0x70] sm:$0xff] -1e+09
          %341 = vst [vmem:[#allocation2 + $0x78] sm:$0xff] -1e+09
          %342 = vst [vmem:[#allocation2 + $0x80] sm:$0xff] -1e+09
          %343 = vst [vmem:[#allocation2 + $0x88] sm:$0xff] -1e+09
          %344 = vst [vmem:[#allocation3] sm:$0xff] 0.0
          %345 = vst [vmem:[#allocation3 + $0x8] sm:$0xff] 0.0
          %346 = vst [vmem:[#allocation3 + $0x10] sm:$0xff] 0.0
          %347 = vst [vmem:[#allocation3 + $0x18] sm:$0xff] 0.0
          %348 = vst [vmem:[#allocation3 + $0x20] sm:$0xff] 0.0
          %349 = vst [vmem:[#allocation3 + $0x28] sm:$0xff] 0.0
          %350 = vst [vmem:[#allocation3 + $0x30] sm:$0xff] 0.0
          %351 = vst [vmem:[#allocation3 + $0x38] sm:$0xff] 0.0
          %352 = vst [vmem:[#allocation3 + $0x40] sm:$0xff] 0.0
          %353 = vst [vmem:[#allocation3 + $0x48] sm:$0xff] 0.0
          %354 = vst [vmem:[#allocation3 + $0x50] sm:$0xff] 0.0
          %355 = vst [vmem:[#allocation3 + $0x58] sm:$0xff] 0.0
          %356 = vst [vmem:[#allocation3 + $0x60] sm:$0xff] 0.0
          %357 = vst [vmem:[#allocation3 + $0x68] sm:$0xff] 0.0
          %358 = vst [vmem:[#allocation3 + $0x70] sm:$0xff] 0.0
          %359 = vst [vmem:[#allocation3 + $0x78] sm:$0xff] 0.0
          %360 = vst [vmem:[#allocation3 + $0x80] sm:$0xff] 0.0
          %361 = vst [vmem:[#allocation3 + $0x88] sm:$0xff] 0.0
        $region52: #{tpu_custom_call.1} parent=39 // pred_fallthru
          _
        %p362 = scmp.ne.s32.totalorder %s27, 2
        // Predicated region
        $region53: #{tpu_custom_call.1} parent=39 // pred_check
          %p363 = pneg %p362
        $region54: #{tpu_custom_call.1} parent=39 // pred_check_branch
          %365 = sbr.rel (%p363) target = $region56
        $region55: #{tpu_custom_call.1} parent=39 // pred_region
          %v366 = vld [vmem:[%s266] sm:$0xff]
          %v367 = vld [vmem:[%s266 + $0x10] sm:$0xff]
          %v368 = vld [vmem:[%s266 + $0x20] sm:$0xff]
          %v369 = vld [vmem:[%s266 + $0x30] sm:$0xff]
          %v370 = vld [vmem:[%s266 + $0x40] sm:$0xff]
          %v371 = vld [vmem:[%s266 + $0x50] sm:$0xff]
          %v372 = vld [vmem:[%s266 + $0x60] sm:$0xff]
          %v373 = vld [vmem:[%s266 + $0x70] sm:$0xff]
          %v374 = vld [vmem:[%s266 + $0x80] sm:$0xff]
          %v375 = vld [vmem:[%s266 + $0x90] sm:$0xff]
          %v376 = vld [vmem:[%s266 + $0xa0] sm:$0xff]
          %v377 = vld [vmem:[%s266 + $0xb0] sm:$0xff]
          %v378 = vld [vmem:[%s266 + $0xc0] sm:$0xff]
          %v379 = vld [vmem:[%s266 + $0xd0] sm:$0xff]
          %v380 = vld [vmem:[%s266 + $0xe0] sm:$0xff]
          %v381 = vld [vmem:[%s266 + $0xf0] sm:$0xff]
          %v382 = vld [vmem:[%s266 + $0x100] sm:$0xff]
          %v383 = vld [vmem:[%s266 + $0x110] sm:$0xff]
          %v384 = vld [vmem:[#allocation2] sm:$0xff]
          %v385 = vld [vmem:[#allocation2 + $0x8] sm:$0xff]
          %v386 = vld [vmem:[#allocation2 + $0x10] sm:$0xff]
          %v387 = vld [vmem:[#allocation2 + $0x18] sm:$0xff]
          %v388 = vld [vmem:[#allocation2 + $0x20] sm:$0xff]
          %v389 = vld [vmem:[#allocation2 + $0x28] sm:$0xff]
          %v390 = vld [vmem:[#allocation2 + $0x30] sm:$0xff]
          %v391 = vld [vmem:[#allocation2 + $0x38] sm:$0xff]
          %v392 = vld [vmem:[#allocation2 + $0x40] sm:$0xff]
          %v393 = vld [vmem:[#allocation2 + $0x48] sm:$0xff]
          %v394 = vld [vmem:[#allocation2 + $0x50] sm:$0xff]
          %v395 = vld [vmem:[#allocation2 + $0x58] sm:$0xff]
          %v396 = vld [vmem:[#allocation2 + $0x60] sm:$0xff]
          %v397 = vld [vmem:[#allocation2 + $0x68] sm:$0xff]
          %v398 = vld [vmem:[#allocation2 + $0x70] sm:$0xff]
          %v399 = vld [vmem:[#allocation2 + $0x78] sm:$0xff]
          %v400 = vld [vmem:[#allocation2 + $0x80] sm:$0xff]
          %v401 = vld [vmem:[#allocation2 + $0x88] sm:$0xff]
          %v402 = vmax.f32 %v384, %v366
          %v403 = vmax.f32 %v385, %v367
          %v404 = vmax.f32 %v386, %v368
          %v405 = vmax.f32 %v387, %v369
          %v406 = vmax.f32 %v388, %v370
          %v407 = vmax.f32 %v389, %v371
          %v408 = vmax.f32 %v390, %v372
          %v409 = vmax.f32 %v391, %v373
          %v410 = vmax.f32 %v392, %v374
          %v411 = vmax.f32 %v393, %v375
          %v412 = vmax.f32 %v394, %v376
          %v413 = vmax.f32 %v395, %v377
          %v414 = vmax.f32 %v396, %v378
          %v415 = vmax.f32 %v397, %v379
          %v416 = vmax.f32 %v398, %v380
          %v417 = vmax.f32 %v399, %v381
          %v418 = vmax.f32 %v400, %v382
          %v419 = vmax.f32 %v401, %v383
          %420 = vst [vmem:[#allocation2] sm:$0xff] %v402
          %421 = vst [vmem:[#allocation2 + $0x8] sm:$0xff] %v403
          %422 = vst [vmem:[#allocation2 + $0x10] sm:$0xff] %v404
          %423 = vst [vmem:[#allocation2 + $0x18] sm:$0xff] %v405
          %424 = vst [vmem:[#allocation2 + $0x20] sm:$0xff] %v406
          %425 = vst [vmem:[#allocation2 + $0x28] sm:$0xff] %v407
          %426 = vst [vmem:[#allocation2 + $0x30] sm:$0xff] %v408
          %427 = vst [vmem:[#allocation2 + $0x38] sm:$0xff] %v409
          %428 = vst [vmem:[#allocation2 + $0x40] sm:$0xff] %v410
          %429 = vst [vmem:[#allocation2 + $0x48] sm:$0xff] %v411
          %430 = vst [vmem:[#allocation2 + $0x50] sm:$0xff] %v412
          %431 = vst [vmem:[#allocation2 + $0x58] sm:$0xff] %v413
          %432 = vst [vmem:[#allocation2 + $0x60] sm:$0xff] %v414
          %433 = vst [vmem:[#allocation2 + $0x68] sm:$0xff] %v415
          %434 = vst [vmem:[#allocation2 + $0x70] sm:$0xff] %v416
          %435 = vst [vmem:[#allocation2 + $0x78] sm:$0xff] %v417
          %436 = vst [vmem:[#allocation2 + $0x80] sm:$0xff] %v418
          %437 = vst [vmem:[#allocation2 + $0x88] sm:$0xff] %v419
          %v438 = vmul.f32 %v366, 1.442695
          %v439 = vpow.pop %v438
          %v440 = vmul.f32 %v367, 1.442695
          %v441 = vpow.pop %v440
          %v442 = vmul.f32 %v368, 1.442695
          %v443 = vpow.pop %v442
          %v444 = vmul.f32 %v369, 1.442695
          %v445 = vpow.pop %v444
          %v446 = vmul.f32 %v370, 1.442695
          %v447 = vpow.pop %v446
          %v448 = vmul.f32 %v371, 1.442695
          %v449 = vpow.pop %v448
          %v450 = vmul.f32 %v372, 1.442695
          %v451 = vpow.pop %v450
          %v452 = vmul.f32 %v373, 1.442695
          %v453 = vpow.pop %v452
          %v454 = vmul.f32 %v374, 1.442695
          %v455 = vpow.pop %v454
          %v456 = vmul.f32 %v375, 1.442695
          %v457 = vpow.pop %v456
          %v458 = vmul.f32 %v376, 1.442695
          %v459 = vpow.pop %v458
          %v460 = vmul.f32 %v377, 1.442695
          %v461 = vpow.pop %v460
          %v462 = vmul.f32 %v378, 1.442695
          %v463 = vpow.pop %v462
          %v464 = vmul.f32 %v379, 1.442695
          %v465 = vpow.pop %v464
          %v466 = vmul.f32 %v380, 1.442695
          %v467 = vpow.pop %v466
          %v468 = vmul.f32 %v381, 1.442695
          %v469 = vpow.pop %v468
          %v470 = vmul.f32 %v382, 1.442695
          %v471 = vpow.pop %v470
          %v472 = vmul.f32 %v383, 1.442695
          %v473 = vpow.pop %v472
          %v474 = vmul.f32 %v439, %v366
          %v475 = vmul.f32 %v441, %v367
          %v476 = vmul.f32 %v443, %v368
          %v477 = vmul.f32 %v445, %v369
          %v478 = vmul.f32 %v447, %v370
          %v479 = vmul.f32 %v449, %v371
          %v480 = vmul.f32 %v451, %v372
          %v481 = vmul.f32 %v453, %v373
          %v482 = vmul.f32 %v455, %v374
          %v483 = vmul.f32 %v457, %v375
          %v484 = vmul.f32 %v459, %v376
          %v485 = vmul.f32 %v461, %v377
          %v486 = vmul.f32 %v463, %v378
          %v487 = vmul.f32 %v465, %v379
          %v488 = vmul.f32 %v467, %v380
          %v489 = vmul.f32 %v469, %v381
          %v490 = vmul.f32 %v471, %v382
          %v491 = vmul.f32 %v473, %v383
          %v492 = vld [vmem:[#allocation3] sm:$0xff]
          %v493 = vld [vmem:[#allocation3 + $0x8] sm:$0xff]
          %v494 = vld [vmem:[#allocation3 + $0x10] sm:$0xff]
          %v495 = vld [vmem:[#allocation3 + $0x18] sm:$0xff]
          %v496 = vld [vmem:[#allocation3 + $0x20] sm:$0xff]
          %v497 = vld [vmem:[#allocation3 + $0x28] sm:$0xff]
          %v498 = vld [vmem:[#allocation3 + $0x30] sm:$0xff]
          %v499 = vld [vmem:[#allocation3 + $0x38] sm:$0xff]
          %v500 = vld [vmem:[#allocation3 + $0x40] sm:$0xff]
          %v501 = vld [vmem:[#allocation3 + $0x48] sm:$0xff]
          %v502 = vld [vmem:[#allocation3 + $0x50] sm:$0xff]
          %v503 = vld [vmem:[#allocation3 + $0x58] sm:$0xff]
          %v504 = vld [vmem:[#allocation3 + $0x60] sm:$0xff]
          %v505 = vld [vmem:[#allocation3 + $0x68] sm:$0xff]
          %v506 = vld [vmem:[#allocation3 + $0x70] sm:$0xff]
          %v507 = vld [vmem:[#allocation3 + $0x78] sm:$0xff]
          %v508 = vld [vmem:[#allocation3 + $0x80] sm:$0xff]
          %v509 = vld [vmem:[#allocation3 + $0x88] sm:$0xff]
          %v510 = vadd.f32 %v492, %v474
          %v511 = vadd.f32 %v493, %v475
          %v512 = vadd.f32 %v494, %v476
          %v513 = vadd.f32 %v495, %v477
          %v514 = vadd.f32 %v496, %v478
          %v515 = vadd.f32 %v497, %v479
          %v516 = vadd.f32 %v498, %v480
          %v517 = vadd.f32 %v499, %v481
          %v518 = vadd.f32 %v500, %v482
          %v519 = vadd.f32 %v501, %v483
          %v520 = vadd.f32 %v502, %v484
          %v521 = vadd.f32 %v503, %v485
          %v522 = vadd.f32 %v504, %v486
          %v523 = vadd.f32 %v505, %v487
          %v524 = vadd.f32 %v506, %v488
          %v525 = vadd.f32 %v507, %v489
          %v526 = vadd.f32 %v508, %v490
          %v527 = vadd.f32 %v509, %v491
          %528 = vst [vmem:[#allocation3] sm:$0xff] %v510
          %529 = vst [vmem:[#allocation3 + $0x8] sm:$0xff] %v511
          %530 = vst [vmem:[#allocation3 + $0x10] sm:$0xff] %v512
          %531 = vst [vmem:[#allocation3 + $0x18] sm:$0xff] %v513
          %532 = vst [vmem:[#allocation3 + $0x20] sm:$0xff] %v514
          %533 = vst [vmem:[#allocation3 + $0x28] sm:$0xff] %v515
          %534 = vst [vmem:[#allocation3 + $0x30] sm:$0xff] %v516
          %535 = vst [vmem:[#allocation3 + $0x38] sm:$0xff] %v517
          %536 = vst [vmem:[#allocation3 + $0x40] sm:$0xff] %v518
          %537 = vst [vmem:[#allocation3 + $0x48] sm:$0xff] %v519
          %538 = vst [vmem:[#allocation3 + $0x50] sm:$0xff] %v520
          %539 = vst [vmem:[#allocation3 + $0x58] sm:$0xff] %v521
          %540 = vst [vmem:[#allocation3 + $0x60] sm:$0xff] %v522
          %541 = vst [vmem:[#allocation3 + $0x68] sm:$0xff] %v523
          %542 = vst [vmem:[#allocation3 + $0x70] sm:$0xff] %v524
          %543 = vst [vmem:[#allocation3 + $0x78] sm:$0xff] %v525
          %544 = vst [vmem:[#allocation3 + $0x80] sm:$0xff] %v526
          %545 = vst [vmem:[#allocation3 + $0x88] sm:$0xff] %v527
          %v546 = vld [vmem:[%s266 + $0x8] sm:$0xff]
          %v547 = vld [vmem:[%s266 + $0x18] sm:$0xff]
          %v548 = vld [vmem:[%s266 + $0x28] sm:$0xff]
          %v549 = vld [vmem:[%s266 + $0x38] sm:$0xff]
          %v550 = vld [vmem:[%s266 + $0x48] sm:$0xff]
          %v551 = vld [vmem:[%s266 + $0x58] sm:$0xff]
          %v552 = vld [vmem:[%s266 + $0x68] sm:$0xff]
          %v553 = vld [vmem:[%s266 + $0x78] sm:$0xff]
          %v554 = vld [vmem:[%s266 + $0x88] sm:$0xff]
          %v555 = vld [vmem:[%s266 + $0x98] sm:$0xff]
          %v556 = vld [vmem:[%s266 + $0xa8] sm:$0xff]
          %v557 = vld [vmem:[%s266 + $0xb8] sm:$0xff]
          %v558 = vld [vmem:[%s266 + $0xc8] sm:$0xff]
          %v559 = vld [vmem:[%s266 + $0xd8] sm:$0xff]
          %v560 = vld [vmem:[%s266 + $0xe8] sm:$0xff]
          %v561 = vld [vmem:[%s266 + $0xf8] sm:$0xff]
          %v562 = vld [vmem:[%s266 + $0x108] sm:$0xff]
          %v563 = vld [vmem:[%s266 + $0x118] sm:$0xff]
          %v564 = vld [vmem:[#allocation2] sm:$0xff]
          %v565 = vld [vmem:[#allocation2 + $0x8] sm:$0xff]
          %v566 = vld [vmem:[#allocation2 + $0x10] sm:$0xff]
          %v567 = vld [vmem:[#allocation2 + $0x18] sm:$0xff]
          %v568 = vld [vmem:[#allocation2 + $0x20] sm:$0xff]
          %v569 = vld [vmem:[#allocation2 + $0x28] sm:$0xff]
          %v570 = vld [vmem:[#allocation2 + $0x30] sm:$0xff]
          %v571 = vld [vmem:[#allocation2 + $0x38] sm:$0xff]
          %v572 = vld [vmem:[#allocation2 + $0x40] sm:$0xff]
          %v573 = vld [vmem:[#allocation2 + $0x48] sm:$0xff]
          %v574 = vld [vmem:[#allocation2 + $0x50] sm:$0xff]
          %v575 = vld [vmem:[#allocation2 + $0x58] sm:$0xff]
          %v576 = vld [vmem:[#allocation2 + $0x60] sm:$0xff]
          %v577 = vld [vmem:[#allocation2 + $0x68] sm:$0xff]
          %v578 = vld [vmem:[#allocation2 + $0x70] sm:$0xff]
          %v579 = vld [vmem:[#allocation2 + $0x78] sm:$0xff]
          %v580 = vld [vmem:[#allocation2 + $0x80] sm:$0xff]
          %v581 = vld [vmem:[#allocation2 + $0x88] sm:$0xff]
          %v582 = vmax.f32 %v564, %v546
          %v583 = vmax.f32 %v565, %v547
          %v584 = vmax.f32 %v566, %v548
          %v585 = vmax.f32 %v567, %v549
          %v586 = vmax.f32 %v568, %v550
          %v587 = vmax.f32 %v569, %v551
          %v588 = vmax.f32 %v570, %v552
          %v589 = vmax.f32 %v571, %v553
          %v590 = vmax.f32 %v572, %v554
          %v591 = vmax.f32 %v573, %v555
          %v592 = vmax.f32 %v574, %v556
          %v593 = vmax.f32 %v575, %v557
          %v594 = vmax.f32 %v576, %v558
          %v595 = vmax.f32 %v577, %v559
          %v596 = vmax.f32 %v578, %v560
          %v597 = vmax.f32 %v579, %v561
          %v598 = vmax.f32 %v580, %v562
          %v599 = vmax.f32 %v581, %v563
          %600 = vst [vmem:[#allocation2] sm:$0xff] %v582
          %601 = vst [vmem:[#allocation2 + $0x8] sm:$0xff] %v583
          %602 = vst [vmem:[#allocation2 + $0x10] sm:$0xff] %v584
          %603 = vst [vmem:[#allocation2 + $0x18] sm:$0xff] %v585
          %604 = vst [vmem:[#allocation2 + $0x20] sm:$0xff] %v586
          %605 = vst [vmem:[#allocation2 + $0x28] sm:$0xff] %v587
          %606 = vst [vmem:[#allocation2 + $0x30] sm:$0xff] %v588
          %607 = vst [vmem:[#allocation2 + $0x38] sm:$0xff] %v589
          %608 = vst [vmem:[#allocation2 + $0x40] sm:$0xff] %v590
          %609 = vst [vmem:[#allocation2 + $0x48] sm:$0xff] %v591
          %610 = vst [vmem:[#allocation2 + $0x50] sm:$0xff] %v592
          %611 = vst [vmem:[#allocation2 + $0x58] sm:$0xff] %v593
          %612 = vst [vmem:[#allocation2 + $0x60] sm:$0xff] %v594
          %613 = vst [vmem:[#allocation2 + $0x68] sm:$0xff] %v595
          %614 = vst [vmem:[#allocation2 + $0x70] sm:$0xff] %v596
          %615 = vst [vmem:[#allocation2 + $0x78] sm:$0xff] %v597
          %616 = vst [vmem:[#allocation2 + $0x80] sm:$0xff] %v598
          %617 = vst [vmem:[#allocation2 + $0x88] sm:$0xff] %v599
          %v618 = vmul.f32 %v546, 1.442695
          %v619 = vpow.pop %v618
          %v620 = vmul.f32 %v547, 1.442695
          %v621 = vpow.pop %v620
          %v622 = vmul.f32 %v548, 1.442695
          %v623 = vpow.pop %v622
          %v624 = vmul.f32 %v549, 1.442695
          %v625 = vpow.pop %v624
          %v626 = vmul.f32 %v550, 1.442695
          %v627 = vpow.pop %v626
          %v628 = vmul.f32 %v551, 1.442695
          %v629 = vpow.pop %v628
          %v630 = vmul.f32 %v552, 1.442695
          %v631 = vpow.pop %v630
          %v632 = vmul.f32 %v553, 1.442695
          %v633 = vpow.pop %v632
          %v634 = vmul.f32 %v554, 1.442695
          %v635 = vpow.pop %v634
          %v636 = vmul.f32 %v555, 1.442695
          %v637 = vpow.pop %v636
          %v638 = vmul.f32 %v556, 1.442695
          %v639 = vpow.pop %v638
          %v640 = vmul.f32 %v557, 1.442695
          %v641 = vpow.pop %v640
          %v642 = vmul.f32 %v558, 1.442695
          %v643 = vpow.pop %v642
          %v644 = vmul.f32 %v559, 1.442695
          %v645 = vpow.pop %v644
          %v646 = vmul.f32 %v560, 1.442695
          %v647 = vpow.pop %v646
          %v648 = vmul.f32 %v561, 1.442695
          %v649 = vpow.pop %v648
          %v650 = vmul.f32 %v562, 1.442695
          %v651 = vpow.pop %v650
          %v652 = vmul.f32 %v563, 1.442695
          %v653 = vpow.pop %v652
          %v654 = vmul.f32 %v619, %v546
          %v655 = vmul.f32 %v621, %v547
          %v656 = vmul.f32 %v623, %v548
          %v657 = vmul.f32 %v625, %v549
          %v658 = vmul.f32 %v627, %v550
          %v659 = vmul.f32 %v629, %v551
          %v660 = vmul.f32 %v631, %v552
          %v661 = vmul.f32 %v633, %v553
          %v662 = vmul.f32 %v635, %v554
          %v663 = vmul.f32 %v637, %v555
          %v664 = vmul.f32 %v639, %v556
          %v665 = vmul.f32 %v641, %v557
          %v666 = vmul.f32 %v643, %v558
          %v667 = vmul.f32 %v645, %v559
          %v668 = vmul.f32 %v647, %v560
          %v669 = vmul.f32 %v649, %v561
          %v670 = vmul.f32 %v651, %v562
          %v671 = vmul.f32 %v653, %v563
          %v672 = vld [vmem:[#allocation3] sm:$0xff]
          %v673 = vld [vmem:[#allocation3 + $0x8] sm:$0xff]
          %v674 = vld [vmem:[#allocation3 + $0x10] sm:$0xff]
          %v675 = vld [vmem:[#allocation3 + $0x18] sm:$0xff]
          %v676 = vld [vmem:[#allocation3 + $0x20] sm:$0xff]
          %v677 = vld [vmem:[#allocation3 + $0x28] sm:$0xff]
          %v678 = vld [vmem:[#allocation3 + $0x30] sm:$0xff]
          %v679 = vld [vmem:[#allocation3 + $0x38] sm:$0xff]
          %v680 = vld [vmem:[#allocation3 + $0x40] sm:$0xff]
          %v681 = vld [vmem:[#allocation3 + $0x48] sm:$0xff]
          %v682 = vld [vmem:[#allocation3 + $0x50] sm:$0xff]
          %v683 = vld [vmem:[#allocation3 + $0x58] sm:$0xff]
          %v684 = vld [vmem:[#allocation3 + $0x60] sm:$0xff]
          %v685 = vld [vmem:[#allocation3 + $0x68] sm:$0xff]
          %v686 = vld [vmem:[#allocation3 + $0x70] sm:$0xff]
          %v687 = vld [vmem:[#allocation3 + $0x78] sm:$0xff]
          %v688 = vld [vmem:[#allocation3 + $0x80] sm:$0xff]
          %v689 = vld [vmem:[#allocation3 + $0x88] sm:$0xff]
          %v690 = vadd.f32 %v672, %v654
          %v691 = vadd.f32 %v673, %v655
          %v692 = vadd.f32 %v674, %v656
          %v693 = vadd.f32 %v675, %v657
          %v694 = vadd.f32 %v676, %v658
          %v695 = vadd.f32 %v677, %v659
          %v696 = vadd.f32 %v678, %v660
          %v697 = vadd.f32 %v679, %v661
          %v698 = vadd.f32 %v680, %v662
          %v699 = vadd.f32 %v681, %v663
          %v700 = vadd.f32 %v682, %v664
          %v701 = vadd.f32 %v683, %v665
          %v702 = vadd.f32 %v684, %v666
          %v703 = vadd.f32 %v685, %v667
          %v704 = vadd.f32 %v686, %v668
          %v705 = vadd.f32 %v687, %v669
          %v706 = vadd.f32 %v688, %v670
          %v707 = vadd.f32 %v689, %v671
          %708 = vst [vmem:[#allocation3] sm:$0xff] %v690
          %709 = vst [vmem:[#allocation3 + $0x8] sm:$0xff] %v691
          %710 = vst [vmem:[#allocation3 + $0x10] sm:$0xff] %v692
          %711 = vst [vmem:[#allocation3 + $0x18] sm:$0xff] %v693
          %712 = vst [vmem:[#allocation3 + $0x20] sm:$0xff] %v694
          %713 = vst [vmem:[#allocation3 + $0x28] sm:$0xff] %v695
          %714 = vst [vmem:[#allocation3 + $0x30] sm:$0xff] %v696
          %715 = vst [vmem:[#allocation3 + $0x38] sm:$0xff] %v697
          %716 = vst [vmem:[#allocation3 + $0x40] sm:$0xff] %v698
          %717 = vst [vmem:[#allocation3 + $0x48] sm:$0xff] %v699
          %718 = vst [vmem:[#allocation3 + $0x50] sm:$0xff] %v700
          %719 = vst [vmem:[#allocation3 + $0x58] sm:$0xff] %v701
          %720 = vst [vmem:[#allocation3 + $0x60] sm:$0xff] %v702
          %721 = vst [vmem:[#allocation3 + $0x68] sm:$0xff] %v703
          %722 = vst [vmem:[#allocation3 + $0x70] sm:$0xff] %v704
          %723 = vst [vmem:[#allocation3 + $0x78] sm:$0xff] %v705
          %724 = vst [vmem:[#allocation3 + $0x80] sm:$0xff] %v706
          %725 = vst [vmem:[#allocation3 + $0x88] sm:$0xff] %v707
        $region56: #{tpu_custom_call.1} parent=39 // pred_fallthru
          _
        %p726 = scmp.eq.s32.totalorder %s27, 2
        // Predicated region
        $region57: #{tpu_custom_call.1} parent=39 // pred_check
          %p727 = pneg %p726
        $region58: #{tpu_custom_call.1} parent=39 // pred_check_branch
          %729 = sbr.rel (%p727) target = $region60
        $region59: #{tpu_custom_call.1} parent=39 // pred_region
          %v730 = vld [vmem:[%s266] sm:$0xff]
          %v731 = vld [vmem:[%s266 + $0x10] sm:$0xff]
          %v732 = vld [vmem:[%s266 + $0x20] sm:$0xff]
          %v733 = vld [vmem:[%s266 + $0x30] sm:$0xff]
          %v734 = vld [vmem:[%s266 + $0x40] sm:$0xff]
          %v735 = vld [vmem:[%s266 + $0x50] sm:$0xff]
          %v736 = vld [vmem:[%s266 + $0x60] sm:$0xff]
          %v737 = vld [vmem:[%s266 + $0x70] sm:$0xff]
          %v738 = vld [vmem:[%s266 + $0x80] sm:$0xff]
          %v739 = vld [vmem:[%s266 + $0x90] sm:$0xff]
          %v740 = vld [vmem:[%s266 + $0xa0] sm:$0xff]
          %v741 = vld [vmem:[%s266 + $0xb0] sm:$0xff]
          %v742 = vld [vmem:[%s266 + $0xc0] sm:$0xff]
          %v743 = vld [vmem:[%s266 + $0xd0] sm:$0xff]
          %v744 = vld [vmem:[%s266 + $0xe0] sm:$0xff]
          %v745 = vld [vmem:[%s266 + $0xf0] sm:$0xff]
          %v746 = vld [vmem:[%s266 + $0x100] sm:$0xff]
          %v747 = vld [vmem:[%s266 + $0x110] sm:$0xff]
          %v748 = vlaneseq
          %v749 = vand.u32 %v748, 127
          %s750 = smul.u32 %s27, 256
          %v751 = vstv %s750
          %v752 = vadd.s32 %v749, %v751
          %vm753 = vcmp.lt.s32.totalorder %v752, 640
          %v754 = vsel %vm753, %v730, -1e+09
          %v755 = vsel %vm753, %v731, -1e+09
          %v756 = vsel %vm753, %v732, -1e+09
          %v757 = vsel %vm753, %v733, -1e+09
          %v758 = vsel %vm753, %v734, -1e+09
          %v759 = vsel %vm753, %v735, -1e+09
          %v760 = vsel %vm753, %v736, -1e+09
          %v761 = vsel %vm753, %v737, -1e+09
          %v762 = vsel %vm753, %v738, -1e+09
          %v763 = vsel %vm753, %v739, -1e+09
          %v764 = vsel %vm753, %v740, -1e+09
          %v765 = vsel %vm753, %v741, -1e+09
          %v766 = vsel %vm753, %v742, -1e+09
          %v767 = vsel %vm753, %v743, -1e+09
          %v768 = vsel %vm753, %v744, -1e+09
          %v769 = vsel %vm753, %v745, -1e+09
          %v770 = vsel %vm753, %v746, -1e+09
          %v771 = vsel %vm753, %v747, -1e+09
          %v772 = vld [vmem:[#allocation2] sm:$0xff]
          %v773 = vld [vmem:[#allocation2 + $0x8] sm:$0xff]
          %v774 = vld [vmem:[#allocation2 + $0x10] sm:$0xff]
          %v775 = vld [vmem:[#allocation2 + $0x18] sm:$0xff]
          %v776 = vld [vmem:[#allocation2 + $0x20] sm:$0xff]
          %v777 = vld [vmem:[#allocation2 + $0x28] sm:$0xff]
          %v778 = vld [vmem:[#allocation2 + $0x30] sm:$0xff]
          %v779 = vld [vmem:[#allocation2 + $0x38] sm:$0xff]
          %v780 = vld [vmem:[#allocation2 + $0x40] sm:$0xff]
          %v781 = vld [vmem:[#allocation2 + $0x48] sm:$0xff]
          %v782 = vld [vmem:[#allocation2 + $0x50] sm:$0xff]
          %v783 = vld [vmem:[#allocation2 + $0x58] sm:$0xff]
          %v784 = vld [vmem:[#allocation2 + $0x60] sm:$0xff]
          %v785 = vld [vmem:[#allocation2 + $0x68] sm:$0xff]
          %v786 = vld [vmem:[#allocation2 + $0x70] sm:$0xff]
          %v787 = vld [vmem:[#allocation2 + $0x78] sm:$0xff]
          %v788 = vld [vmem:[#allocation2 + $0x80] sm:$0xff]
          %v789 = vld [vmem:[#allocation2 + $0x88] sm:$0xff]
          %v790 = vmax.f32 %v772, %v754
          %v791 = vmax.f32 %v773, %v755
          %v792 = vmax.f32 %v774, %v756
          %v793 = vmax.f32 %v775, %v757
          %v794 = vmax.f32 %v776, %v758
          %v795 = vmax.f32 %v777, %v759
          %v796 = vmax.f32 %v778, %v760
          %v797 = vmax.f32 %v779, %v761
          %v798 = vmax.f32 %v780, %v762
          %v799 = vmax.f32 %v781, %v763
          %v800 = vmax.f32 %v782, %v764
          %v801 = vmax.f32 %v783, %v765
          %v802 = vmax.f32 %v784, %v766
          %v803 = vmax.f32 %v785, %v767
          %v804 = vmax.f32 %v786, %v768
          %v805 = vmax.f32 %v787, %v769
          %v806 = vmax.f32 %v788, %v770
          %v807 = vmax.f32 %v789, %v771
          %808 = vst [vmem:[#allocation2] sm:$0xff] %v790
          %809 = vst [vmem:[#allocation2 + $0x8] sm:$0xff] %v791
          %810 = vst [vmem:[#allocation2 + $0x10] sm:$0xff] %v792
          %811 = vst [vmem:[#allocation2 + $0x18] sm:$0xff] %v793
          %812 = vst [vmem:[#allocation2 + $0x20] sm:$0xff] %v794
          %813 = vst [vmem:[#allocation2 + $0x28] sm:$0xff] %v795
          %814 = vst [vmem:[#allocation2 + $0x30] sm:$0xff] %v796
          %815 = vst [vmem:[#allocation2 + $0x38] sm:$0xff] %v797
          %816 = vst [vmem:[#allocation2 + $0x40] sm:$0xff] %v798
          %817 = vst [vmem:[#allocation2 + $0x48] sm:$0xff] %v799
          %818 = vst [vmem:[#allocation2 + $0x50] sm:$0xff] %v800
          %819 = vst [vmem:[#allocation2 + $0x58] sm:$0xff] %v801
          %820 = vst [vmem:[#allocation2 + $0x60] sm:$0xff] %v802
          %821 = vst [vmem:[#allocation2 + $0x68] sm:$0xff] %v803
          %822 = vst [vmem:[#allocation2 + $0x70] sm:$0xff] %v804
          %823 = vst [vmem:[#allocation2 + $0x78] sm:$0xff] %v805
          %824 = vst [vmem:[#allocation2 + $0x80] sm:$0xff] %v806
          %825 = vst [vmem:[#allocation2 + $0x88] sm:$0xff] %v807
          %v826 = vmul.f32 %v754, 1.442695
          %v827 = vpow.pop %v826
          %v828 = vmul.f32 %v755, 1.442695
          %v829 = vpow.pop %v828
          %v830 = vmul.f32 %v756, 1.442695
          %v831 = vpow.pop %v830
          %v832 = vmul.f32 %v757, 1.442695
          %v833 = vpow.pop %v832
          %v834 = vmul.f32 %v758, 1.442695
          %v835 = vpow.pop %v834
          %v836 = vmul.f32 %v759, 1.442695
          %v837 = vpow.pop %v836
          %v838 = vmul.f32 %v760, 1.442695
          %v839 = vpow.pop %v838
          %v840 = vmul.f32 %v761, 1.442695
          %v841 = vpow.pop %v840
          %v842 = vmul.f32 %v762, 1.442695
          %v843 = vpow.pop %v842
          %v844 = vmul.f32 %v763, 1.442695
          %v845 = vpow.pop %v844
          %v846 = vmul.f32 %v764, 1.442695
          %v847 = vpow.pop %v846
          %v848 = vmul.f32 %v765, 1.442695
          %v849 = vpow.pop %v848
          %v850 = vmul.f32 %v766, 1.442695
          %v851 = vpow.pop %v850
          %v852 = vmul.f32 %v767, 1.442695
          %v853 = vpow.pop %v852
          %v854 = vmul.f32 %v768, 1.442695
          %v855 = vpow.pop %v854
          %v856 = vmul.f32 %v769, 1.442695
          %v857 = vpow.pop %v856
          %v858 = vmul.f32 %v770, 1.442695
          %v859 = vpow.pop %v858
          %v860 = vmul.f32 %v771, 1.442695
          %v861 = vpow.pop %v860
          %v862 = vmul.f32 %v827, %v754
          %v863 = vmul.f32 %v829, %v755
          %v864 = vmul.f32 %v831, %v756
          %v865 = vmul.f32 %v833, %v757
          %v866 = vmul.f32 %v835, %v758
          %v867 = vmul.f32 %v837, %v759
          %v868 = vmul.f32 %v839, %v760
          %v869 = vmul.f32 %v841, %v761
          %v870 = vmul.f32 %v843, %v762
          %v871 = vmul.f32 %v845, %v763
          %v872 = vmul.f32 %v847, %v764
          %v873 = vmul.f32 %v849, %v765
          %v874 = vmul.f32 %v851, %v766
          %v875 = vmul.f32 %v853, %v767
          %v876 = vmul.f32 %v855, %v768
          %v877 = vmul.f32 %v857, %v769
          %v878 = vmul.f32 %v859, %v770
          %v879 = vmul.f32 %v861, %v771
          %v880 = vld [vmem:[#allocation3] sm:$0xff]
          %v881 = vld [vmem:[#allocation3 + $0x8] sm:$0xff]
          %v882 = vld [vmem:[#allocation3 + $0x10] sm:$0xff]
          %v883 = vld [vmem:[#allocation3 + $0x18] sm:$0xff]
          %v884 = vld [vmem:[#allocation3 + $0x20] sm:$0xff]
          %v885 = vld [vmem:[#allocation3 + $0x28] sm:$0xff]
          %v886 = vld [vmem:[#allocation3 + $0x30] sm:$0xff]
          %v887 = vld [vmem:[#allocation3 + $0x38] sm:$0xff]
          %v888 = vld [vmem:[#allocation3 + $0x40] sm:$0xff]
          %v889 = vld [vmem:[#allocation3 + $0x48] sm:$0xff]
          %v890 = vld [vmem:[#allocation3 + $0x50] sm:$0xff]
          %v891 = vld [vmem:[#allocation3 + $0x58] sm:$0xff]
          %v892 = vld [vmem:[#allocation3 + $0x60] sm:$0xff]
          %v893 = vld [vmem:[#allocation3 + $0x68] sm:$0xff]
          %v894 = vld [vmem:[#allocation3 + $0x70] sm:$0xff]
          %v895 = vld [vmem:[#allocation3 + $0x78] sm:$0xff]
          %v896 = vld [vmem:[#allocation3 + $0x80] sm:$0xff]
          %v897 = vld [vmem:[#allocation3 + $0x88] sm:$0xff]
          %v898 = vadd.f32 %v880, %v862
          %v899 = vadd.f32 %v881, %v863
          %v900 = vadd.f32 %v882, %v864
          %v901 = vadd.f32 %v883, %v865
          %v902 = vadd.f32 %v884, %v866
          %v903 = vadd.f32 %v885, %v867
          %v904 = vadd.f32 %v886, %v868
          %v905 = vadd.f32 %v887, %v869
          %v906 = vadd.f32 %v888, %v870
          %v907 = vadd.f32 %v889, %v871
          %v908 = vadd.f32 %v890, %v872
          %v909 = vadd.f32 %v891, %v873
          %v910 = vadd.f32 %v892, %v874
          %v911 = vadd.f32 %v893, %v875
          %v912 = vadd.f32 %v894, %v876
          %v913 = vadd.f32 %v895, %v877
          %v914 = vadd.f32 %v896, %v878
          %v915 = vadd.f32 %v897, %v879
          %916 = vst [vmem:[#allocation3] sm:$0xff] %v898
          %917 = vst [vmem:[#allocation3 + $0x8] sm:$0xff] %v899
          %918 = vst [vmem:[#allocation3 + $0x10] sm:$0xff] %v900
          %919 = vst [vmem:[#allocation3 + $0x18] sm:$0xff] %v901
          %920 = vst [vmem:[#allocation3 + $0x20] sm:$0xff] %v902
          %921 = vst [vmem:[#allocation3 + $0x28] sm:$0xff] %v903
          %922 = vst [vmem:[#allocation3 + $0x30] sm:$0xff] %v904
          %923 = vst [vmem:[#allocation3 + $0x38] sm:$0xff] %v905
          %924 = vst [vmem:[#allocation3 + $0x40] sm:$0xff] %v906
          %925 = vst [vmem:[#allocation3 + $0x48] sm:$0xff] %v907
          %926 = vst [vmem:[#allocation3 + $0x50] sm:$0xff] %v908
          %927 = vst [vmem:[#allocation3 + $0x58] sm:$0xff] %v909
          %928 = vst [vmem:[#allocation3 + $0x60] sm:$0xff] %v910
          %929 = vst [vmem:[#allocation3 + $0x68] sm:$0xff] %v911
          %930 = vst [vmem:[#allocation3 + $0x70] sm:$0xff] %v912
          %931 = vst [vmem:[#allocation3 + $0x78] sm:$0xff] %v913
          %932 = vst [vmem:[#allocation3 + $0x80] sm:$0xff] %v914
          %933 = vst [vmem:[#allocation3 + $0x88] sm:$0xff] %v915
          %v934 = vld [vmem:[%s266 + $0x8] sm:$0xff]
          %v935 = vld [vmem:[%s266 + $0x18] sm:$0xff]
          %v936 = vld [vmem:[%s266 + $0x28] sm:$0xff]
          %v937 = vld [vmem:[%s266 + $0x38] sm:$0xff]
          %v938 = vld [vmem:[%s266 + $0x48] sm:$0xff]
          %v939 = vld [vmem:[%s266 + $0x58] sm:$0xff]
          %v940 = vld [vmem:[%s266 + $0x68] sm:$0xff]
          %v941 = vld [vmem:[%s266 + $0x78] sm:$0xff]
          %v942 = vld [vmem:[%s266 + $0x88] sm:$0xff]
          %v943 = vld [vmem:[%s266 + $0x98] sm:$0xff]
          %v944 = vld [vmem:[%s266 + $0xa8] sm:$0xff]
          %v945 = vld [vmem:[%s266 + $0xb8] sm:$0xff]
          %v946 = vld [vmem:[%s266 + $0xc8] sm:$0xff]
          %v947 = vld [vmem:[%s266 + $0xd8] sm:$0xff]
          %v948 = vld [vmem:[%s266 + $0xe8] sm:$0xff]
          %v949 = vld [vmem:[%s266 + $0xf8] sm:$0xff]
          %v950 = vld [vmem:[%s266 + $0x108] sm:$0xff]
          %v951 = vld [vmem:[%s266 + $0x118] sm:$0xff]
          %s952 = sadd.s32 %s750, 128
          %v953 = vstv %s952
          %v954 = vadd.s32 %v749, %v953
          %vm955 = vcmp.lt.s32.totalorder %v954, 640
          %v956 = vsel %vm955, %v934, -1e+09
          %v957 = vsel %vm955, %v935, -1e+09
          %v958 = vsel %vm955, %v936, -1e+09
          %v959 = vsel %vm955, %v937, -1e+09
          %v960 = vsel %vm955, %v938, -1e+09
          %v961 = vsel %vm955, %v939, -1e+09
          %v962 = vsel %vm955, %v940, -1e+09
          %v963 = vsel %vm955, %v941, -1e+09
          %v964 = vsel %vm955, %v942, -1e+09
          %v965 = vsel %vm955, %v943, -1e+09
          %v966 = vsel %vm955, %v944, -1e+09
          %v967 = vsel %vm955, %v945, -1e+09
          %v968 = vsel %vm955, %v946, -1e+09
          %v969 = vsel %vm955, %v947, -1e+09
          %v970 = vsel %vm955, %v948, -1e+09
          %v971 = vsel %vm955, %v949, -1e+09
          %v972 = vsel %vm955, %v950, -1e+09
          %v973 = vsel %vm955, %v951, -1e+09
          %v974 = vld [vmem:[#allocation2] sm:$0xff]
          %v975 = vld [vmem:[#allocation2 + $0x8] sm:$0xff]
          %v976 = vld [vmem:[#allocation2 + $0x10] sm:$0xff]
          %v977 = vld [vmem:[#allocation2 + $0x18] sm:$0xff]
          %v978 = vld [vmem:[#allocation2 + $0x20] sm:$0xff]
          %v979 = vld [vmem:[#allocation2 + $0x28] sm:$0xff]
          %v980 = vld [vmem:[#allocation2 + $0x30] sm:$0xff]
          %v981 = vld [vmem:[#allocation2 + $0x38] sm:$0xff]
          %v982 = vld [vmem:[#allocation2 + $0x40] sm:$0xff]
          %v983 = vld [vmem:[#allocation2 + $0x48] sm:$0xff]
          %v984 = vld [vmem:[#allocation2 + $0x50] sm:$0xff]
          %v985 = vld [vmem:[#allocation2 + $0x58] sm:$0xff]
          %v986 = vld [vmem:[#allocation2 + $0x60] sm:$0xff]
          %v987 = vld [vmem:[#allocation2 + $0x68] sm:$0xff]
          %v988 = vld [vmem:[#allocation2 + $0x70] sm:$0xff]
          %v989 = vld [vmem:[#allocation2 + $0x78] sm:$0xff]
          %v990 = vld [vmem:[#allocation2 + $0x80] sm:$0xff]
          %v991 = vld [vmem:[#allocation2 + $0x88] sm:$0xff]
          %v992 = vmax.f32 %v974, %v956
          %v993 = vmax.f32 %v975, %v957
          %v994 = vmax.f32 %v976, %v958
          %v995 = vmax.f32 %v977, %v959
          %v996 = vmax.f32 %v978, %v960
          %v997 = vmax.f32 %v979, %v961
          %v998 = vmax.f32 %v980, %v962
          %v999 = vmax.f32 %v981, %v963
          %v1000 = vmax.f32 %v982, %v964
          %v1001 = vmax.f32 %v983, %v965
          %v1002 = vmax.f32 %v984, %v966
          %v1003 = vmax.f32 %v985, %v967
          %v1004 = vmax.f32 %v986, %v968
          %v1005 = vmax.f32 %v987, %v969
          %v1006 = vmax.f32 %v988, %v970
          %v1007 = vmax.f32 %v989, %v971
          %v1008 = vmax.f32 %v990, %v972
          %v1009 = vmax.f32 %v991, %v973
          %1010 = vst [vmem:[#allocation2] sm:$0xff] %v992
          %1011 = vst [vmem:[#allocation2 + $0x8] sm:$0xff] %v993
          %1012 = vst [vmem:[#allocation2 + $0x10] sm:$0xff] %v994
          %1013 = vst [vmem:[#allocation2 + $0x18] sm:$0xff] %v995
          %1014 = vst [vmem:[#allocation2 + $0x20] sm:$0xff] %v996
          %1015 = vst [vmem:[#allocation2 + $0x28] sm:$0xff] %v997
          %1016 = vst [vmem:[#allocation2 + $0x30] sm:$0xff] %v998
          %1017 = vst [vmem:[#allocation2 + $0x38] sm:$0xff] %v999
          %1018 = vst [vmem:[#allocation2 + $0x40] sm:$0xff] %v1000
          %1019 = vst [vmem:[#allocation2 + $0x48] sm:$0xff] %v1001
          %1020 = vst [vmem:[#allocation2 + $0x50] sm:$0xff] %v1002
          %1021 = vst [vmem:[#allocation2 + $0x58] sm:$0xff] %v1003
          %1022 = vst [vmem:[#allocation2 + $0x60] sm:$0xff] %v1004
          %1023 = vst [vmem:[#allocation2 + $0x68] sm:$0xff] %v1005
          %1024 = vst [vmem:[#allocation2 + $0x70] sm:$0xff] %v1006
          %1025 = vst [vmem:[#allocation2 + $0x78] sm:$0xff] %v1007
          %1026 = vst [vmem:[#allocation2 + $0x80] sm:$0xff] %v1008
          %1027 = vst [vmem:[#allocation2 + $0x88] sm:$0xff] %v1009
          %v1028 = vmul.f32 %v956, 1.442695
          %v1029 = vpow.pop %v1028
          %v1030 = vmul.f32 %v957, 1.442695
          %v1031 = vpow.pop %v1030
          %v1032 = vmul.f32 %v958, 1.442695
          %v1033 = vpow.pop %v1032
          %v1034 = vmul.f32 %v959, 1.442695
          %v1035 = vpow.pop %v1034
          %v1036 = vmul.f32 %v960, 1.442695
          %v1037 = vpow.pop %v1036
          %v1038 = vmul.f32 %v961, 1.442695
          %v1039 = vpow.pop %v1038
          %v1040 = vmul.f32 %v962, 1.442695
          %v1041 = vpow.pop %v1040
          %v1042 = vmul.f32 %v963, 1.442695
          %v1043 = vpow.pop %v1042
          %v1044 = vmul.f32 %v964, 1.442695
          %v1045 = vpow.pop %v1044
          %v1046 = vmul.f32 %v965, 1.442695
          %v1047 = vpow.pop %v1046
          %v1048 = vmul.f32 %v966, 1.442695
          %v1049 = vpow.pop %v1048
          %v1050 = vmul.f32 %v967, 1.442695
          %v1051 = vpow.pop %v1050
          %v1052 = vmul.f32 %v968, 1.442695
          %v1053 = vpow.pop %v1052
          %v1054 = vmul.f32 %v969, 1.442695
          %v1055 = vpow.pop %v1054
          %v1056 = vmul.f32 %v970, 1.442695
          %v1057 = vpow.pop %v1056
          %v1058 = vmul.f32 %v971, 1.442695
          %v1059 = vpow.pop %v1058
          %v1060 = vmul.f32 %v972, 1.442695
          %v1061 = vpow.pop %v1060
          %v1062 = vmul.f32 %v973, 1.442695
          %v1063 = vpow.pop %v1062
          %v1064 = vmul.f32 %v1029, %v956
          %v1065 = vmul.f32 %v1031, %v957
          %v1066 = vmul.f32 %v1033, %v958
          %v1067 = vmul.f32 %v1035, %v959
          %v1068 = vmul.f32 %v1037, %v960
          %v1069 = vmul.f32 %v1039, %v961
          %v1070 = vmul.f32 %v1041, %v962
          %v1071 = vmul.f32 %v1043, %v963
          %v1072 = vmul.f32 %v1045, %v964
          %v1073 = vmul.f32 %v1047, %v965
          %v1074 = vmul.f32 %v1049, %v966
          %v1075 = vmul.f32 %v1051, %v967
          %v1076 = vmul.f32 %v1053, %v968
          %v1077 = vmul.f32 %v1055, %v969
          %v1078 = vmul.f32 %v1057, %v970
          %v1079 = vmul.f32 %v1059, %v971
          %v1080 = vmul.f32 %v1061, %v972
          %v1081 = vmul.f32 %v1063, %v973
          %v1082 = vld [vmem:[#allocation3] sm:$0xff]
          %v1083 = vld [vmem:[#allocation3 + $0x8] sm:$0xff]
          %v1084 = vld [vmem:[#allocation3 + $0x10] sm:$0xff]
          %v1085 = vld [vmem:[#allocation3 + $0x18] sm:$0xff]
          %v1086 = vld [vmem:[#allocation3 + $0x20] sm:$0xff]
          %v1087 = vld [vmem:[#allocation3 + $0x28] sm:$0xff]
          %v1088 = vld [vmem:[#allocation3 + $0x30] sm:$0xff]
          %v1089 = vld [vmem:[#allocation3 + $0x38] sm:$0xff]
          %v1090 = vld [vmem:[#allocation3 + $0x40] sm:$0xff]
          %v1091 = vld [vmem:[#allocation3 + $0x48] sm:$0xff]
          %v1092 = vld [vmem:[#allocation3 + $0x50] sm:$0xff]
          %v1093 = vld [vmem:[#allocation3 + $0x58] sm:$0xff]
          %v1094 = vld [vmem:[#allocation3 + $0x60] sm:$0xff]
          %v1095 = vld [vmem:[#allocation3 + $0x68] sm:$0xff]
          %v1096 = vld [vmem:[#allocation3 + $0x70] sm:$0xff]
          %v1097 = vld [vmem:[#allocation3 + $0x78] sm:$0xff]
          %v1098 = vld [vmem:[#allocation3 + $0x80] sm:$0xff]
          %v1099 = vld [vmem:[#allocation3 + $0x88] sm:$0xff]
          %v1100 = vadd.f32 %v1082, %v1064
          %v1101 = vadd.f32 %v1083, %v1065
          %v1102 = vadd.f32 %v1084, %v1066
          %v1103 = vadd.f32 %v1085, %v1067
          %v1104 = vadd.f32 %v1086, %v1068
          %v1105 = vadd.f32 %v1087, %v1069
          %v1106 = vadd.f32 %v1088, %v1070
          %v1107 = vadd.f32 %v1089, %v1071
          %v1108 = vadd.f32 %v1090, %v1072
          %v1109 = vadd.f32 %v1091, %v1073
          %v1110 = vadd.f32 %v1092, %v1074
          %v1111 = vadd.f32 %v1093, %v1075
          %v1112 = vadd.f32 %v1094, %v1076
          %v1113 = vadd.f32 %v1095, %v1077
          %v1114 = vadd.f32 %v1096, %v1078
          %v1115 = vadd.f32 %v1097, %v1079
          %v1116 = vadd.f32 %v1098, %v1080
          %v1117 = vadd.f32 %v1099, %v1081
          %1118 = vst [vmem:[#allocation3] sm:$0xff] %v1100
          %1119 = vst [vmem:[#allocation3 + $0x8] sm:$0xff] %v1101
          %1120 = vst [vmem:[#allocation3 + $0x10] sm:$0xff] %v1102
          %1121 = vst [vmem:[#allocation3 + $0x18] sm:$0xff] %v1103
          %1122 = vst [vmem:[#allocation3 + $0x20] sm:$0xff] %v1104
          %1123 = vst [vmem:[#allocation3 + $0x28] sm:$0xff] %v1105
          %1124 = vst [vmem:[#allocation3 + $0x30] sm:$0xff] %v1106
          %1125 = vst [vmem:[#allocation3 + $0x38] sm:$0xff] %v1107
          %1126 = vst [vmem:[#allocation3 + $0x40] sm:$0xff] %v1108
          %1127 = vst [vmem:[#allocation3 + $0x48] sm:$0xff] %v1109
          %1128 = vst [vmem:[#allocation3 + $0x50] sm:$0xff] %v1110
          %1129 = vst [vmem:[#allocation3 + $0x58] sm:$0xff] %v1111
          %1130 = vst [vmem:[#allocation3 + $0x60] sm:$0xff] %v1112
          %1131 = vst [vmem:[#allocation3 + $0x68] sm:$0xff] %v1113
          %1132 = vst [vmem:[#allocation3 + $0x70] sm:$0xff] %v1114
          %1133 = vst [vmem:[#allocation3 + $0x78] sm:$0xff] %v1115
          %1134 = vst [vmem:[#allocation3 + $0x80] sm:$0xff] %v1116
          %1135 = vst [vmem:[#allocation3 + $0x88] sm:$0xff] %v1117
          %v1136 = vld [vmem:[#allocation2] sm:$0xff]
          %v1137 = vld [vmem:[#allocation2 + $0x8] sm:$0xff]
          %v1138 = vld [vmem:[#allocation2 + $0x10] sm:$0xff]
          %v1139 = vld [vmem:[#allocation2 + $0x18] sm:$0xff]
          %v1140 = vld [vmem:[#allocation2 + $0x20] sm:$0xff]
          %v1141 = vld [vmem:[#allocation2 + $0x28] sm:$0xff]
          %v1142 = vld [vmem:[#allocation2 + $0x30] sm:$0xff]
          %v1143 = vld [vmem:[#allocation2 + $0x38] sm:$0xff]
          %v1144 = vld [vmem:[#allocation2 + $0x40] sm:$0xff]
          %v1145 = vld [vmem:[#allocation2 + $0x48] sm:$0xff]
          %v1146 = vld [vmem:[#allocation2 + $0x50] sm:$0xff]
          %v1147 = vld [vmem:[#allocation2 + $0x58] sm:$0xff]
          %v1148 = vld [vmem:[#allocation2 + $0x60] sm:$0xff]
          %v1149 = vld [vmem:[#allocation2 + $0x68] sm:$0xff]
          %v1150 = vld [vmem:[#allocation2 + $0x70] sm:$0xff]
          %v1151 = vld [vmem:[#allocation2 + $0x78] sm:$0xff]
          %v1152 = vld [vmem:[#allocation2 + $0x80] sm:$0xff]
          %v1153 = vld [vmem:[#allocation2 + $0x88] sm:$0xff]
          %1154 = vmax.xlane.f32.xlu0 %v1136
          %v1155 = vpop.xlane.xlu0 %1154
          %1156 = vmax.xlane.f32.xlu0 %v1137
          %v1157 = vpop.xlane.xlu0 %1156
          %1158 = vmax.xlane.f32.xlu0 %v1138
          %v1159 = vpop.xlane.xlu0 %1158
          %1160 = vmax.xlane.f32.xlu0 %v1139
          %v1161 = vpop.xlane.xlu0 %1160
          %1162 = vmax.xlane.f32.xlu0 %v1140
          %v1163 = vpop.xlane.xlu0 %1162
          %1164 = vmax.xlane.f32.xlu0 %v1141
          %v1165 = vpop.xlane.xlu0 %1164
          %1166 = vmax.xlane.f32.xlu0 %v1142
          %v1167 = vpop.xlane.xlu0 %1166
          %1168 = vmax.xlane.f32.xlu0 %v1143
          %v1169 = vpop.xlane.xlu0 %1168
          %1170 = vmax.xlane.f32.xlu0 %v1144
          %v1171 = vpop.xlane.xlu0 %1170
          %1172 = vmax.xlane.f32.xlu0 %v1145
          %v1173 = vpop.xlane.xlu0 %1172
          %1174 = vmax.xlane.f32.xlu0 %v1146
          %v1175 = vpop.xlane.xlu0 %1174
          %1176 = vmax.xlane.f32.xlu0 %v1147
          %v1177 = vpop.xlane.xlu0 %1176
          %1178 = vmax.xlane.f32.xlu0 %v1148
          %v1179 = vpop.xlane.xlu0 %1178
          %1180 = vmax.xlane.f32.xlu0 %v1149
          %v1181 = vpop.xlane.xlu0 %1180
          %1182 = vmax.xlane.f32.xlu0 %v1150
          %v1183 = vpop.xlane.xlu0 %1182
          %1184 = vmax.xlane.f32.xlu0 %v1151
          %v1185 = vpop.xlane.xlu0 %1184
          %1186 = vmax.xlane.f32.xlu0 %v1152
          %v1187 = vpop.xlane.xlu0 %1186
          %1188 = vmax.xlane.f32.xlu0 %v1153
          %v1189 = vpop.xlane.xlu0 %1188
          %v1190 = vmul.f32 %v1155, 1.442695
          %v1191 = vpow.pop %v1190
          %v1192 = vmul.f32 %v1157, 1.442695
          %v1193 = vpow.pop %v1192
          %v1194 = vmul.f32 %v1159, 1.442695
          %v1195 = vpow.pop %v1194
          %v1196 = vmul.f32 %v1161, 1.442695
          %v1197 = vpow.pop %v1196
          %v1198 = vmul.f32 %v1163, 1.442695
          %v1199 = vpow.pop %v1198
          %v1200 = vmul.f32 %v1165, 1.442695
          %v1201 = vpow.pop %v1200
          %v1202 = vmul.f32 %v1167, 1.442695
          %v1203 = vpow.pop %v1202
          %v1204 = vmul.f32 %v1169, 1.442695
          %v1205 = vpow.pop %v1204
          %v1206 = vmul.f32 %v1171, 1.442695
          %v1207 = vpow.pop %v1206
          %v1208 = vmul.f32 %v1173, 1.442695
          %v1209 = vpow.pop %v1208
          %v1210 = vmul.f32 %v1175, 1.442695
          %v1211 = vpow.pop %v1210
          %v1212 = vmul.f32 %v1177, 1.442695
          %v1213 = vpow.pop %v1212
          %v1214 = vmul.f32 %v1179, 1.442695
          %v1215 = vpow.pop %v1214
          %v1216 = vmul.f32 %v1181, 1.442695
          %v1217 = vpow.pop %v1216
          %v1218 = vmul.f32 %v1183, 1.442695
          %v1219 = vpow.pop %v1218
          %v1220 = vmul.f32 %v1185, 1.442695
          %v1221 = vpow.pop %v1220
          %v1222 = vmul.f32 %v1187, 1.442695
          %v1223 = vpow.pop %v1222
          %v1224 = vmul.f32 %v1189, 1.442695
          %v1225 = vpow.pop %v1224
          %v1226 = vld [vmem:[#allocation3] sm:$0xff]
          %v1227 = vld [vmem:[#allocation3 + $0x8] sm:$0xff]
          %v1228 = vld [vmem:[#allocation3 + $0x10] sm:$0xff]
          %v1229 = vld [vmem:[#allocation3 + $0x18] sm:$0xff]
          %v1230 = vld [vmem:[#allocation3 + $0x20] sm:$0xff]
          %v1231 = vld [vmem:[#allocation3 + $0x28] sm:$0xff]
          %v1232 = vld [vmem:[#allocation3 + $0x30] sm:$0xff]
          %v1233 = vld [vmem:[#allocation3 + $0x38] sm:$0xff]
          %v1234 = vld [vmem:[#allocation3 + $0x40] sm:$0xff]
          %v1235 = vld [vmem:[#allocation3 + $0x48] sm:$0xff]
          %v1236 = vld [vmem:[#allocation3 + $0x50] sm:$0xff]
          %v1237 = vld [vmem:[#allocation3 + $0x58] sm:$0xff]
          %v1238 = vld [vmem:[#allocation3 + $0x60] sm:$0xff]
          %v1239 = vld [vmem:[#allocation3 + $0x68] sm:$0xff]
          %v1240 = vld [vmem:[#allocation3 + $0x70] sm:$0xff]
          %v1241 = vld [vmem:[#allocation3 + $0x78] sm:$0xff]
          %v1242 = vld [vmem:[#allocation3 + $0x80] sm:$0xff]
          %v1243 = vld [vmem:[#allocation3 + $0x88] sm:$0xff]
          %1244 = vadd.xlane.f32.xlu0 %v1226
          %v1245 = vpop.xlane.xlu0 %1244
          %1246 = vadd.xlane.f32.xlu0 %v1227
          %v1247 = vpop.xlane.xlu0 %1246
          %1248 = vadd.xlane.f32.xlu0 %v1228
          %v1249 = vpop.xlane.xlu0 %1248
          %1250 = vadd.xlane.f32.xlu0 %v1229
          %v1251 = vpop.xlane.xlu0 %1250
          %1252 = vadd.xlane.f32.xlu0 %v1230
          %v1253 = vpop.xlane.xlu0 %1252
          %1254 = vadd.xlane.f32.xlu0 %v1231
          %v1255 = vpop.xlane.xlu0 %1254
          %1256 = vadd.xlane.f32.xlu0 %v1232
          %v1257 = vpop.xlane.xlu0 %1256
          %1258 = vadd.xlane.f32.xlu0 %v1233
          %v1259 = vpop.xlane.xlu0 %1258
          %1260 = vadd.xlane.f32.xlu0 %v1234
          %v1261 = vpop.xlane.xlu0 %1260
          %1262 = vadd.xlane.f32.xlu0 %v1235
          %v1263 = vpop.xlane.xlu0 %1262
          %1264 = vadd.xlane.f32.xlu0 %v1236
          %v1265 = vpop.xlane.xlu0 %1264
          %1266 = vadd.xlane.f32.xlu0 %v1237
          %v1267 = vpop.xlane.xlu0 %1266
          %1268 = vadd.xlane.f32.xlu0 %v1238
          %v1269 = vpop.xlane.xlu0 %1268
          %1270 = vadd.xlane.f32.xlu0 %v1239
          %v1271 = vpop.xlane.xlu0 %1270
          %1272 = vadd.xlane.f32.xlu0 %v1240
          %v1273 = vpop.xlane.xlu0 %1272
          %1274 = vadd.xlane.f32.xlu0 %v1241
          %v1275 = vpop.xlane.xlu0 %1274
          %1276 = vadd.xlane.f32.xlu0 %v1242
          %v1277 = vpop.xlane.xlu0 %1276
          %1278 = vadd.xlane.f32.xlu0 %v1243
          %v1279 = vpop.xlane.xlu0 %1278
          %v1280 = vld [vmem:[%s4] sm:$0xff]
          %v1281 = vld [vmem:[%s276] sm:$0xff]
          %v1282 = vld [vmem:[%s276 + $0x8] sm:$0xff]
          %v1283 = vld [vmem:[%s276 + $0x10] sm:$0xff]
          %v1284 = vld [vmem:[%s276 + $0x18] sm:$0xff]
          %v1285 = vld [vmem:[%s276 + $0x20] sm:$0xff]
          %v1286 = vld [vmem:[%s276 + $0x28] sm:$0xff]
          %v1287 = vld [vmem:[%s276 + $0x30] sm:$0xff]
          %v1288 = vld [vmem:[%s276 + $0x38] sm:$0xff]
          %v1289 = vld [vmem:[%s276 + $0x40] sm:$0xff]
          %v1290 = vld [vmem:[%s276 + $0x48] sm:$0xff]
          %v1291 = vld [vmem:[%s276 + $0x50] sm:$0xff]
          %v1292 = vld [vmem:[%s276 + $0x58] sm:$0xff]
          %v1293 = vld [vmem:[%s276 + $0x60] sm:$0xff]
          %v1294 = vld [vmem:[%s276 + $0x68] sm:$0xff]
          %v1295 = vld [vmem:[%s276 + $0x70] sm:$0xff]
          %v1296 = vld [vmem:[%s276 + $0x78] sm:$0xff]
          %v1297 = vld [vmem:[%s276 + $0x80] sm:$0xff]
          %v1298 = vld [vmem:[%s276 + $0x88] sm:$0xff]
          %v1299 = vld [vmem:[%s2] sm:$0xff]
          %v1300 = vld [vmem:[%s2 + $0x8] sm:$0xff]
          %v1301 = vld [vmem:[%s2 + $0x10] sm:$0xff]
          %v1302 = vld [vmem:[%s2 + $0x18] sm:$0xff]
          %v1303 = vld [vmem:[%s2 + $0x20] sm:$0xff]
          %v1304 = vld [vmem:[%s2 + $0x28] sm:$0xff]
          %v1305 = vld [vmem:[%s2 + $0x30] sm:$0xff]
          %v1306 = vld [vmem:[%s2 + $0x38] sm:$0xff]
          %v1307 = vld [vmem:[%s2 + $0x40] sm:$0xff]
          %v1308 = vld [vmem:[%s2 + $0x48] sm:$0xff]
          %v1309 = vld [vmem:[%s2 + $0x50] sm:$0xff]
          %v1310 = vld [vmem:[%s2 + $0x58] sm:$0xff]
          %v1311 = vld [vmem:[%s2 + $0x60] sm:$0xff]
          %v1312 = vld [vmem:[%s2 + $0x68] sm:$0xff]
          %v1313 = vld [vmem:[%s2 + $0x70] sm:$0xff]
          %v1314 = vld [vmem:[%s2 + $0x78] sm:$0xff]
          %v1315 = vperm.slane %v1280, 0
          %v1316 = vmul.f32 %v1191, %v1315
          %v1317 = vmul.f32 %v1193, %v1315
          %v1318 = vmul.f32 %v1195, %v1315
          %v1319 = vmul.f32 %v1197, %v1315
          %v1320 = vmul.f32 %v1199, %v1315
          %v1321 = vmul.f32 %v1201, %v1315
          %v1322 = vmul.f32 %v1203, %v1315
          %v1323 = vmul.f32 %v1205, %v1315
          %v1324 = vmul.f32 %v1207, %v1315
          %v1325 = vmul.f32 %v1209, %v1315
          %v1326 = vmul.f32 %v1211, %v1315
          %v1327 = vmul.f32 %v1213, %v1315
          %v1328 = vmul.f32 %v1215, %v1315
          %v1329 = vmul.f32 %v1217, %v1315
          %v1330 = vmul.f32 %v1219, %v1315
          %v1331 = vmul.f32 %v1221, %v1315
          %v1332 = vmul.f32 %v1223, %v1315
          %v1333 = vmul.f32 %v1225, %v1315
          %1334 = vmatpush.msra.mxu0 %v1314
          %1335 = vmatpush.msra.mxu0 %v1313
          %1336 = vmatpush.msra.mxu0 %v1312
          %1337 = vmatpush.msra.mxu0 %v1311
          %1338 = vmatpush.msra.mxu0 %v1310
          %1339 = vmatpush.msra.mxu0 %v1309
          %1340 = vmatpush.msra.mxu0 %v1308
          %1341 = vmatpush.msra.mxu0 %v1307
          %1342 = vmatpush.msra.mxu0 %v1306
          %1343 = vmatpush.msra.mxu0 %v1305
          %1344 = vmatpush.msra.mxu0 %v1304
          %1345 = vmatpush.msra.mxu0 %v1303
          %1346 = vmatpush.msra.mxu0 %v1302
          %1347 = vmatpush.msra.mxu0 %v1301
          %1348 = vmatpush.msra.mxu0 %v1300
          %1349 = vmatpush.msra.mxu0 %v1299
          %1350 = vmatmul.f32.gmra.mxu0 %v1281
          %v1351 = vpop.f32.mrf.mxu0
          %v1352 = vadd.f32 %v1316, %v1351
          %1353 = vmatmul.f32.gmra.mxu0 %v1282
          %v1354 = vpop.f32.mrf.mxu0
          %v1355 = vadd.f32 %v1317, %v1354
          %1356 = vmatmul.f32.gmra.mxu0 %v1283
          %v1357 = vpop.f32.mrf.mxu0
          %v1358 = vadd.f32 %v1318, %v1357
          %1359 = vmatmul.f32.gmra.mxu0 %v1284
          %v1360 = vpop.f32.mrf.mxu0
          %v1361 = vadd.f32 %v1319, %v1360
          %1362 = vmatmul.f32.gmra.mxu0 %v1285
          %v1363 = vpop.f32.mrf.mxu0
          %v1364 = vadd.f32 %v1320, %v1363
          %1365 = vmatmul.f32.gmra.mxu0 %v1286
          %v1366 = vpop.f32.mrf.mxu0
          %v1367 = vadd.f32 %v1321, %v1366
          %1368 = vmatmul.f32.gmra.mxu0 %v1287
          %v1369 = vpop.f32.mrf.mxu0
          %v1370 = vadd.f32 %v1322, %v1369
          %1371 = vmatmul.f32.gmra.mxu0 %v1288
          %v1372 = vpop.f32.mrf.mxu0
          %v1373 = vadd.f32 %v1323, %v1372
          %1374 = vmatmul.f32.gmra.mxu0 %v1289
          %v1375 = vpop.f32.mrf.mxu0
          %v1376 = vadd.f32 %v1324, %v1375
          %1377 = vmatmul.f32.gmra.mxu0 %v1290
          %v1378 = vpop.f32.mrf.mxu0
          %v1379 = vadd.f32 %v1325, %v1378
          %1380 = vmatmul.f32.gmra.mxu0 %v1291
          %v1381 = vpop.f32.mrf.mxu0
          %v1382 = vadd.f32 %v1326, %v1381
          %1383 = vmatmul.f32.gmra.mxu0 %v1292
          %v1384 = vpop.f32.mrf.mxu0
          %v1385 = vadd.f32 %v1327, %v1384
          %1386 = vmatmul.f32.gmra.mxu0 %v1293
          %v1387 = vpop.f32.mrf.mxu0
          %v1388 = vadd.f32 %v1328, %v1387
          %1389 = vmatmul.f32.gmra.mxu0 %v1294
          %v1390 = vpop.f32.mrf.mxu0
          %v1391 = vadd.f32 %v1329, %v1390
          %1392 = vmatmul.f32.gmra.mxu0 %v1295
          %v1393 = vpop.f32.mrf.mxu0
          %v1394 = vadd.f32 %v1330, %v1393
          %1395 = vmatmul.f32.gmra.mxu0 %v1296
          %v1396 = vpop.f32.mrf.mxu0
          %v1397 = vadd.f32 %v1331, %v1396
          %1398 = vmatmul.f32.gmra.mxu0 %v1297
          %v1399 = vpop.f32.mrf.mxu0
          %v1400 = vadd.f32 %v1332, %v1399
          %1401 = vmatmul.f32.gmra.mxu0 %v1298
          %v1402 = vpop.f32.mrf.mxu0
          %v1403 = vadd.f32 %v1333, %v1402
          %1404 = vdwg.mxu0
          %v1405 = vperm.slane %v1280, 1
          %v1406 = vmul.f32 %v1245, %v1405
          %v1407 = vmul.f32 %v1247, %v1405
          %v1408 = vmul.f32 %v1249, %v1405
          %v1409 = vmul.f32 %v1251, %v1405
          %v1410 = vmul.f32 %v1253, %v1405
          %v1411 = vmul.f32 %v1255, %v1405
          %v1412 = vmul.f32 %v1257, %v1405
          %v1413 = vmul.f32 %v1259, %v1405
          %v1414 = vmul.f32 %v1261, %v1405
          %v1415 = vmul.f32 %v1263, %v1405
          %v1416 = vmul.f32 %v1265, %v1405
          %v1417 = vmul.f32 %v1267, %v1405
          %v1418 = vmul.f32 %v1269, %v1405
          %v1419 = vmul.f32 %v1271, %v1405
          %v1420 = vmul.f32 %v1273, %v1405
          %v1421 = vmul.f32 %v1275, %v1405
          %v1422 = vmul.f32 %v1277, %v1405
          %v1423 = vmul.f32 %v1279, %v1405
          %v1424 = vadd.f32 %v1352, %v1406
          %v1425 = vadd.f32 %v1355, %v1407
          %v1426 = vadd.f32 %v1358, %v1408
          %v1427 = vadd.f32 %v1361, %v1409
          %v1428 = vadd.f32 %v1364, %v1410
          %v1429 = vadd.f32 %v1367, %v1411
          %v1430 = vadd.f32 %v1370, %v1412
          %v1431 = vadd.f32 %v1373, %v1413
          %v1432 = vadd.f32 %v1376, %v1414
          %v1433 = vadd.f32 %v1379, %v1415
          %v1434 = vadd.f32 %v1382, %v1416
          %v1435 = vadd.f32 %v1385, %v1417
          %v1436 = vadd.f32 %v1388, %v1418
          %v1437 = vadd.f32 %v1391, %v1419
          %v1438 = vadd.f32 %v1394, %v1420
          %v1439 = vadd.f32 %v1397, %v1421
          %v1440 = vadd.f32 %v1400, %v1422
          %v1441 = vadd.f32 %v1403, %v1423
          %v1442 = vperm.slane %v1280, 2
          %v1443 = vadd.f32 %v1424, %v1442
          %v1444 = vadd.f32 %v1425, %v1442
          %v1445 = vadd.f32 %v1426, %v1442
          %v1446 = vadd.f32 %v1427, %v1442
          %v1447 = vadd.f32 %v1428, %v1442
          %v1448 = vadd.f32 %v1429, %v1442
          %v1449 = vadd.f32 %v1430, %v1442
          %v1450 = vadd.f32 %v1431, %v1442
          %v1451 = vadd.f32 %v1432, %v1442
          %v1452 = vadd.f32 %v1433, %v1442
          %v1453 = vadd.f32 %v1434, %v1442
          %v1454 = vadd.f32 %v1435, %v1442
          %v1455 = vadd.f32 %v1436, %v1442
          %v1456 = vadd.f32 %v1437, %v1442
          %v1457 = vadd.f32 %v1438, %v1442
          %v1458 = vadd.f32 %v1439, %v1442
          %v1459 = vadd.f32 %v1440, %v1442
          %v1460 = vadd.f32 %v1441, %v1442
          %v1461 = vmax.f32 %v1443, 0.0
          %v1462 = vmax.f32 %v1444, 0.0
          %v1463 = vmax.f32 %v1445, 0.0
          %v1464 = vmax.f32 %v1446, 0.0
          %v1465 = vmax.f32 %v1447, 0.0
          %v1466 = vmax.f32 %v1448, 0.0
          %v1467 = vmax.f32 %v1449, 0.0
          %v1468 = vmax.f32 %v1450, 0.0
          %v1469 = vmax.f32 %v1451, 0.0
          %v1470 = vmax.f32 %v1452, 0.0
          %v1471 = vmax.f32 %v1453, 0.0
          %v1472 = vmax.f32 %v1454, 0.0
          %v1473 = vmax.f32 %v1455, 0.0
          %v1474 = vmax.f32 %v1456, 0.0
          %v1475 = vmax.f32 %v1457, 0.0
          %v1476 = vmax.f32 %v1458, 0.0
          %v1477 = vmax.f32 %v1459, 0.0
          %v1478 = vmax.f32 %v1460, 0.0
          %v1479 = vld [vmem:[%s3] sm:$0xff]
          %v1480 = vld [vmem:[%s3 + $0x8] sm:$0xff]
          %v1481 = vld [vmem:[%s3 + $0x10] sm:$0xff]
          %v1482 = vld [vmem:[%s3 + $0x18] sm:$0xff]
          %v1483 = vperm.slane %v1280, 3
          %vm1484 = vcmask 261120
          %v1486 = vsel %vm1484, %v1461, 0
          %v1489 = vsel %vm1484, %v1462, 0
          %v1492 = vsel %vm1484, %v1463, 0
          %v1495 = vsel %vm1484, %v1464, 0
          %v1498 = vsel %vm1484, %v1465, 0
          %v1501 = vsel %vm1484, %v1466, 0
          %v1504 = vsel %vm1484, %v1467, 0
          %v1507 = vsel %vm1484, %v1468, 0
          %v1510 = vsel %vm1484, %v1469, 0
          %v1513 = vsel %vm1484, %v1470, 0
          %v1516 = vsel %vm1484, %v1471, 0
          %v1519 = vsel %vm1484, %v1472, 0
          %v1522 = vsel %vm1484, %v1473, 0
          %v1525 = vsel %vm1484, %v1474, 0
          %v1528 = vsel %vm1484, %v1475, 0
          %v1531 = vsel %vm1484, %v1476, 0
          %v1534 = vsel %vm1484, %v1477, 0
          %v1537 = vsel %vm1484, %v1478, 0
          %1539 = vmatpush.msra.mxu0 0.0
          %1540 = vmatpush.msra.mxu0 0.0
          %1541 = vmatpush.msra.mxu0 0.0
          %1542 = vmatpush.msra.mxu0 0.0
          %1543 = vmatpush.msra.mxu0 0.0
          %1544 = vmatpush.msra.mxu0 0.0
          %1545 = vmatpush.msra.mxu0 0.0
          %1546 = vmatpush.msra.mxu0 0.0
          %1547 = vmatpush.msra.mxu0 0.0
          %1548 = vmatpush.msra.mxu0 0.0
          %1549 = vmatpush.msra.mxu0 0.0
          %1550 = vmatpush.msra.mxu0 0.0
          %1551 = vmatpush.msra.mxu0 %v1482
          %1552 = vmatpush.msra.mxu0 %v1481
          %1553 = vmatpush.msra.mxu0 %v1480
          %1554 = vmatpush.msra.mxu0 %v1479
          %1555 = vmatmul.f32.gmra.mxu0 %v1486
          %v1556 = vpop.f32.mrf.mxu0
          %v1557 = vadd.f32 %v1483, %v1556
          %1558 = vmatmul.f32.gmra.mxu0 %v1489
          %v1559 = vpop.f32.mrf.mxu0
          %v1560 = vadd.f32 %v1483, %v1559
          %1561 = vmatmul.f32.gmra.mxu0 %v1492
          %v1562 = vpop.f32.mrf.mxu0
          %v1563 = vadd.f32 %v1483, %v1562
          %1564 = vmatmul.f32.gmra.mxu0 %v1495
          %v1565 = vpop.f32.mrf.mxu0
          %v1566 = vadd.f32 %v1483, %v1565
          %1567 = vmatmul.f32.gmra.mxu0 %v1498
          %v1568 = vpop.f32.mrf.mxu0
          %v1569 = vadd.f32 %v1483, %v1568
          %1570 = vmatmul.f32.gmra.mxu0 %v1501
          %v1571 = vpop.f32.mrf.mxu0
          %v1572 = vadd.f32 %v1483, %v1571
          %1573 = vmatmul.f32.gmra.mxu0 %v1504
          %v1574 = vpop.f32.mrf.mxu0
          %v1575 = vadd.f32 %v1483, %v1574
          %1576 = vmatmul.f32.gmra.mxu0 %v1507
          %v1577 = vpop.f32.mrf.mxu0
          %v1578 = vadd.f32 %v1483, %v1577
          %1579 = vmatmul.f32.gmra.mxu0 %v1510
          %v1580 = vpop.f32.mrf.mxu0
          %v1581 = vadd.f32 %v1483, %v1580
          %1582 = vmatmul.f32.gmra.mxu0 %v1513
          %v1583 = vpop.f32.mrf.mxu0
          %v1584 = vadd.f32 %v1483, %v1583
          %1585 = vmatmul.f32.gmra.mxu0 %v1516
          %v1586 = vpop.f32.mrf.mxu0
          %v1587 = vadd.f32 %v1483, %v1586
          %1588 = vmatmul.f32.gmra.mxu0 %v1519
          %v1589 = vpop.f32.mrf.mxu0
          %v1590 = vadd.f32 %v1483, %v1589
          %1591 = vmatmul.f32.gmra.mxu0 %v1522
          %v1592 = vpop.f32.mrf.mxu0
          %v1593 = vadd.f32 %v1483, %v1592
          %1594 = vmatmul.f32.gmra.mxu0 %v1525
          %v1595 = vpop.f32.mrf.mxu0
          %v1596 = vadd.f32 %v1483, %v1595
          %1597 = vmatmul.f32.gmra.mxu0 %v1528
          %v1598 = vpop.f32.mrf.mxu0
          %v1599 = vadd.f32 %v1483, %v1598
          %1600 = vmatmul.f32.gmra.mxu0 %v1531
          %v1601 = vpop.f32.mrf.mxu0
          %v1602 = vadd.f32 %v1483, %v1601
          %1603 = vmatmul.f32.gmra.mxu0 %v1534
          %v1604 = vpop.f32.mrf.mxu0
          %v1605 = vadd.f32 %v1483, %v1604
          %1606 = vmatmul.f32.gmra.mxu0 %v1537
          %v1607 = vpop.f32.mrf.mxu0
          %v1608 = vadd.f32 %v1483, %v1607
          %1609 = vdwg.mxu0
          %v1610 = vmax.f32 %v1557, 0.0
          %v1611 = vmax.f32 %v1560, 0.0
          %v1612 = vmax.f32 %v1563, 0.0
          %v1613 = vmax.f32 %v1566, 0.0
          %v1614 = vmax.f32 %v1569, 0.0
          %v1615 = vmax.f32 %v1572, 0.0
          %v1616 = vmax.f32 %v1575, 0.0
          %v1617 = vmax.f32 %v1578, 0.0
          %v1618 = vmax.f32 %v1581, 0.0
          %v1619 = vmax.f32 %v1584, 0.0
          %v1620 = vmax.f32 %v1587, 0.0
          %v1621 = vmax.f32 %v1590, 0.0
          %v1622 = vmax.f32 %v1593, 0.0
          %v1623 = vmax.f32 %v1596, 0.0
          %v1624 = vmax.f32 %v1599, 0.0
          %v1625 = vmax.f32 %v1602, 0.0
          %v1626 = vmax.f32 %v1605, 0.0
          %v1627 = vmax.f32 %v1608, 0.0
          %v1628 = vld [vmem:[%s3 + $0x20] sm:$0xff]
          %v1629 = vld [vmem:[%s3 + $0x28] sm:$0xff]
          %v1630 = vld [vmem:[%s3 + $0x30] sm:$0xff]
          %v1631 = vld [vmem:[%s3 + $0x38] sm:$0xff]
          %v1632 = vperm.slane %v1280, 4
          %v1634 = vsel %vm1484, %v1610, 0
          %v1637 = vsel %vm1484, %v1611, 0
          %v1640 = vsel %vm1484, %v1612, 0
          %v1643 = vsel %vm1484, %v1613, 0
          %v1646 = vsel %vm1484, %v1614, 0
          %v1649 = vsel %vm1484, %v1615, 0
          %v1652 = vsel %vm1484, %v1616, 0
          %v1655 = vsel %vm1484, %v1617, 0
          %v1658 = vsel %vm1484, %v1618, 0
          %v1661 = vsel %vm1484, %v1619, 0
          %v1664 = vsel %vm1484, %v1620, 0
          %v1667 = vsel %vm1484, %v1621, 0
          %v1670 = vsel %vm1484, %v1622, 0
          %v1673 = vsel %vm1484, %v1623, 0
          %v1676 = vsel %vm1484, %v1624, 0
          %v1679 = vsel %vm1484, %v1625, 0
          %v1682 = vsel %vm1484, %v1626, 0
          %v1685 = vsel %vm1484, %v1627, 0
          %1687 = vmatpush.msra.mxu0 0.0
          %1688 = vmatpush.msra.mxu0 0.0
          %1689 = vmatpush.msra.mxu0 0.0
          %1690 = vmatpush.msra.mxu0 0.0
          %1691 = vmatpush.msra.mxu0 0.0
          %1692 = vmatpush.msra.mxu0 0.0
          %1693 = vmatpush.msra.mxu0 0.0
          %1694 = vmatpush.msra.mxu0 0.0
          %1695 = vmatpush.msra.mxu0 0.0
          %1696 = vmatpush.msra.mxu0 0.0
          %1697 = vmatpush.msra.mxu0 0.0
          %1698 = vmatpush.msra.mxu0 0.0
          %1699 = vmatpush.msra.mxu0 %v1631
          %1700 = vmatpush.msra.mxu0 %v1630
          %1701 = vmatpush.msra.mxu0 %v1629
          %1702 = vmatpush.msra.mxu0 %v1628
          %1703 = vmatmul.f32.gmra.mxu0 %v1634
          %v1704 = vpop.f32.mrf.mxu0
          %v1705 = vadd.f32 %v1632, %v1704
          %1706 = vmatmul.f32.gmra.mxu0 %v1637
          %v1707 = vpop.f32.mrf.mxu0
          %v1708 = vadd.f32 %v1632, %v1707
          %1709 = vmatmul.f32.gmra.mxu0 %v1640
          %v1710 = vpop.f32.mrf.mxu0
          %v1711 = vadd.f32 %v1632, %v1710
          %1712 = vmatmul.f32.gmra.mxu0 %v1643
          %v1713 = vpop.f32.mrf.mxu0
          %v1714 = vadd.f32 %v1632, %v1713
          %1715 = vmatmul.f32.gmra.mxu0 %v1646
          %v1716 = vpop.f32.mrf.mxu0
          %v1717 = vadd.f32 %v1632, %v1716
          %1718 = vmatmul.f32.gmra.mxu0 %v1649
          %v1719 = vpop.f32.mrf.mxu0
          %v1720 = vadd.f32 %v1632, %v1719
          %1721 = vmatmul.f32.gmra.mxu0 %v1652
          %v1722 = vpop.f32.mrf.mxu0
          %v1723 = vadd.f32 %v1632, %v1722
          %1724 = vmatmul.f32.gmra.mxu0 %v1655
          %v1725 = vpop.f32.mrf.mxu0
          %v1726 = vadd.f32 %v1632, %v1725
          %1727 = vmatmul.f32.gmra.mxu0 %v1658
          %v1728 = vpop.f32.mrf.mxu0
          %v1729 = vadd.f32 %v1632, %v1728
          %1730 = vmatmul.f32.gmra.mxu0 %v1661
          %v1731 = vpop.f32.mrf.mxu0
          %v1732 = vadd.f32 %v1632, %v1731
          %1733 = vmatmul.f32.gmra.mxu0 %v1664
          %v1734 = vpop.f32.mrf.mxu0
          %v1735 = vadd.f32 %v1632, %v1734
          %1736 = vmatmul.f32.gmra.mxu0 %v1667
          %v1737 = vpop.f32.mrf.mxu0
          %v1738 = vadd.f32 %v1632, %v1737
          %1739 = vmatmul.f32.gmra.mxu0 %v1670
          %v1740 = vpop.f32.mrf.mxu0
          %v1741 = vadd.f32 %v1632, %v1740
          %1742 = vmatmul.f32.gmra.mxu0 %v1673
          %v1743 = vpop.f32.mrf.mxu0
          %v1744 = vadd.f32 %v1632, %v1743
          %1745 = vmatmul.f32.gmra.mxu0 %v1676
          %v1746 = vpop.f32.mrf.mxu0
          %v1747 = vadd.f32 %v1632, %v1746
          %1748 = vmatmul.f32.gmra.mxu0 %v1679
          %v1749 = vpop.f32.mrf.mxu0
          %v1750 = vadd.f32 %v1632, %v1749
          %1751 = vmatmul.f32.gmra.mxu0 %v1682
          %v1752 = vpop.f32.mrf.mxu0
          %v1753 = vadd.f32 %v1632, %v1752
          %1754 = vmatmul.f32.gmra.mxu0 %v1685
          %v1755 = vpop.f32.mrf.mxu0
          %v1756 = vadd.f32 %v1632, %v1755
          %1757 = vdwg.mxu0
          %v1758 = vmax.f32 %v1705, 0.0
          %v1759 = vmax.f32 %v1708, 0.0
          %v1760 = vmax.f32 %v1711, 0.0
          %v1761 = vmax.f32 %v1714, 0.0
          %v1762 = vmax.f32 %v1717, 0.0
          %v1763 = vmax.f32 %v1720, 0.0
          %v1764 = vmax.f32 %v1723, 0.0
          %v1765 = vmax.f32 %v1726, 0.0
          %v1766 = vmax.f32 %v1729, 0.0
          %v1767 = vmax.f32 %v1732, 0.0
          %v1768 = vmax.f32 %v1735, 0.0
          %v1769 = vmax.f32 %v1738, 0.0
          %v1770 = vmax.f32 %v1741, 0.0
          %v1771 = vmax.f32 %v1744, 0.0
          %v1772 = vmax.f32 %v1747, 0.0
          %v1773 = vmax.f32 %v1750, 0.0
          %v1774 = vmax.f32 %v1753, 0.0
          %v1775 = vmax.f32 %v1756, 0.0
          %v1776 = vperm.slane %v1280, 5
          %v1777 = vmul.f32 %v1758, %v1776
          %v1778 = vmul.f32 %v1759, %v1776
          %v1779 = vmul.f32 %v1760, %v1776
          %v1780 = vmul.f32 %v1761, %v1776
          %v1781 = vmul.f32 %v1762, %v1776
          %v1782 = vmul.f32 %v1763, %v1776
          %v1783 = vmul.f32 %v1764, %v1776
          %v1784 = vmul.f32 %v1765, %v1776
          %v1785 = vmul.f32 %v1766, %v1776
          %v1786 = vmul.f32 %v1767, %v1776
          %v1787 = vmul.f32 %v1768, %v1776
          %v1788 = vmul.f32 %v1769, %v1776
          %v1789 = vmul.f32 %v1770, %v1776
          %v1790 = vmul.f32 %v1771, %v1776
          %v1791 = vmul.f32 %v1772, %v1776
          %v1792 = vmul.f32 %v1773, %v1776
          %v1793 = vmul.f32 %v1774, %v1776
          %v1794 = vmul.f32 %v1775, %v1776
          %v1795 = vsel %vm1484, %v1777, 0.0
          %1796 = vadd.xlane.f32.xlu0 %v1795
          %v1797 = vpop.xlane.xlu0 %1796
          %v1798 = vsel %vm1484, %v1778, 0.0
          %1799 = vadd.xlane.f32.xlu0 %v1798
          %v1800 = vpop.xlane.xlu0 %1799
          %v1801 = vsel %vm1484, %v1779, 0.0
          %1802 = vadd.xlane.f32.xlu0 %v1801
          %v1803 = vpop.xlane.xlu0 %1802
          %v1804 = vsel %vm1484, %v1780, 0.0
          %1805 = vadd.xlane.f32.xlu0 %v1804
          %v1806 = vpop.xlane.xlu0 %1805
          %v1807 = vsel %vm1484, %v1781, 0.0
          %1808 = vadd.xlane.f32.xlu0 %v1807
          %v1809 = vpop.xlane.xlu0 %1808
          %v1810 = vsel %vm1484, %v1782, 0.0
          %1811 = vadd.xlane.f32.xlu0 %v1810
          %v1812 = vpop.xlane.xlu0 %1811
          %v1813 = vsel %vm1484, %v1783, 0.0
          %1814 = vadd.xlane.f32.xlu0 %v1813
          %v1815 = vpop.xlane.xlu0 %1814
          %v1816 = vsel %vm1484, %v1784, 0.0
          %1817 = vadd.xlane.f32.xlu0 %v1816
          %v1818 = vpop.xlane.xlu0 %1817
          %v1819 = vsel %vm1484, %v1785, 0.0
          %1820 = vadd.xlane.f32.xlu0 %v1819
          %v1821 = vpop.xlane.xlu0 %1820
          %v1822 = vsel %vm1484, %v1786, 0.0
          %1823 = vadd.xlane.f32.xlu0 %v1822
          %v1824 = vpop.xlane.xlu0 %1823
          %v1825 = vsel %vm1484, %v1787, 0.0
          %1826 = vadd.xlane.f32.xlu0 %v1825
          %v1827 = vpop.xlane.xlu0 %1826
          %v1828 = vsel %vm1484, %v1788, 0.0
          %1829 = vadd.xlane.f32.xlu0 %v1828
          %v1830 = vpop.xlane.xlu0 %1829
          %v1831 = vsel %vm1484, %v1789, 0.0
          %1832 = vadd.xlane.f32.xlu0 %v1831
          %v1833 = vpop.xlane.xlu0 %1832
          %v1834 = vsel %vm1484, %v1790, 0.0
          %1835 = vadd.xlane.f32.xlu0 %v1834
          %v1836 = vpop.xlane.xlu0 %1835
          %v1837 = vsel %vm1484, %v1791, 0.0
          %1838 = vadd.xlane.f32.xlu0 %v1837
          %v1839 = vpop.xlane.xlu0 %1838
          %v1840 = vsel %vm1484, %v1792, 0.0
          %1841 = vadd.xlane.f32.xlu0 %v1840
          %v1842 = vpop.xlane.xlu0 %1841
          %v1843 = vsel %vm1484, %v1793, 0.0
          %1844 = vadd.xlane.f32.xlu0 %v1843
          %v1845 = vpop.xlane.xlu0 %1844
          %v1846 = vsel %vm1484, %v1794, 0.0
          %1847 = vadd.xlane.f32.xlu0 %v1846
          %v1848 = vpop.xlane.xlu0 %1847
          %v1849 = vperm.slane %v1280, 6
          %v1850 = vadd.f32 %v1797, %v1849
          %v1851 = vadd.f32 %v1800, %v1849
          %v1852 = vadd.f32 %v1803, %v1849
          %v1853 = vadd.f32 %v1806, %v1849
          %v1854 = vadd.f32 %v1809, %v1849
          %v1855 = vadd.f32 %v1812, %v1849
          %v1856 = vadd.f32 %v1815, %v1849
          %v1857 = vadd.f32 %v1818, %v1849
          %v1858 = vadd.f32 %v1821, %v1849
          %v1859 = vadd.f32 %v1824, %v1849
          %v1860 = vadd.f32 %v1827, %v1849
          %v1861 = vadd.f32 %v1830, %v1849
          %v1862 = vadd.f32 %v1833, %v1849
          %v1863 = vadd.f32 %v1836, %v1849
          %v1864 = vadd.f32 %v1839, %v1849
          %v1865 = vadd.f32 %v1842, %v1849
          %v1866 = vadd.f32 %v1845, %v1849
          %v1867 = vadd.f32 %v1848, %v1849
          %v1868 = vxor.u32 %v1850, 2147483648
          %v1869 = vxor.u32 %v1851, 2147483648
          %v1870 = vxor.u32 %v1852, 2147483648
          %v1871 = vxor.u32 %v1853, 2147483648
          %v1872 = vxor.u32 %v1854, 2147483648
          %v1873 = vxor.u32 %v1855, 2147483648
          %v1874 = vxor.u32 %v1856, 2147483648
          %v1875 = vxor.u32 %v1857, 2147483648
          %v1876 = vxor.u32 %v1858, 2147483648
          %v1877 = vxor.u32 %v1859, 2147483648
          %v1878 = vxor.u32 %v1860, 2147483648
          %v1879 = vxor.u32 %v1861, 2147483648
          %v1880 = vxor.u32 %v1862, 2147483648
          %v1881 = vxor.u32 %v1863, 2147483648
          %v1882 = vxor.u32 %v1864, 2147483648
          %v1883 = vxor.u32 %v1865, 2147483648
          %v1884 = vxor.u32 %v1866, 2147483648
          %v1885 = vxor.u32 %v1867, 2147483648
          %v1886 = vmul.f32 %v1868, 1.442695
          %v1887 = vpow.pop %v1886
          %v1888 = vmul.f32 %v1869, 1.442695
          %v1889 = vpow.pop %v1888
          %v1890 = vmul.f32 %v1870, 1.442695
          %v1891 = vpow.pop %v1890
          %v1892 = vmul.f32 %v1871, 1.442695
          %v1893 = vpow.pop %v1892
          %v1894 = vmul.f32 %v1872, 1.442695
          %v1895 = vpow.pop %v1894
          %v1896 = vmul.f32 %v1873, 1.442695
          %v1897 = vpow.pop %v1896
          %v1898 = vmul.f32 %v1874, 1.442695
          %v1899 = vpow.pop %v1898
          %v1900 = vmul.f32 %v1875, 1.442695
          %v1901 = vpow.pop %v1900
          %v1902 = vmul.f32 %v1876, 1.442695
          %v1903 = vpow.pop %v1902
          %v1904 = vmul.f32 %v1877, 1.442695
          %v1905 = vpow.pop %v1904
          %v1906 = vmul.f32 %v1878, 1.442695
          %v1907 = vpow.pop %v1906
          %v1908 = vmul.f32 %v1879, 1.442695
          %v1909 = vpow.pop %v1908
          %v1910 = vmul.f32 %v1880, 1.442695
          %v1911 = vpow.pop %v1910
          %v1912 = vmul.f32 %v1881, 1.442695
          %v1913 = vpow.pop %v1912
          %v1914 = vmul.f32 %v1882, 1.442695
          %v1915 = vpow.pop %v1914
          %v1916 = vmul.f32 %v1883, 1.442695
          %v1917 = vpow.pop %v1916
          %v1918 = vmul.f32 %v1884, 1.442695
          %v1919 = vpow.pop %v1918
          %v1920 = vmul.f32 %v1885, 1.442695
          %v1921 = vpow.pop %v1920
          %v1922 = vadd.f32 %v1887, 1.0
          %v1923 = vadd.f32 %v1889, 1.0
          %v1924 = vadd.f32 %v1891, 1.0
          %v1925 = vadd.f32 %v1893, 1.0
          %v1926 = vadd.f32 %v1895, 1.0
          %v1927 = vadd.f32 %v1897, 1.0
          %v1928 = vadd.f32 %v1899, 1.0
          %v1929 = vadd.f32 %v1901, 1.0
          %v1930 = vadd.f32 %v1903, 1.0
          %v1931 = vadd.f32 %v1905, 1.0
          %v1932 = vadd.f32 %v1907, 1.0
          %v1933 = vadd.f32 %v1909, 1.0
          %v1934 = vadd.f32 %v1911, 1.0
          %v1935 = vadd.f32 %v1913, 1.0
          %v1936 = vadd.f32 %v1915, 1.0
          %v1937 = vadd.f32 %v1917, 1.0
          %v1938 = vadd.f32 %v1919, 1.0
          %v1939 = vadd.f32 %v1921, 1.0
          %v1940 = vrcp.pop %v1922
          %v1941 = vmul.f32 %v1922, %v1940
          %v1942 = vsub.f32 1.0, %v1941
          %v1943 = vmul.f32 %v1940, %v1942
          %v1944 = vadd.f32 %v1940, %v1943
          %vm1945 = vweird.f32 %v1922
          %vm1946 = vweird.f32 %v1940
          %vm1947 = vmor %vm1945, %vm1946
          %v1948 = vsel %vm1947, %v1940, %v1944
          %v1949 = vand.u32 2147483647, %v1922
          %vm1950 = vcmp.eq.f32.partialorder %v1949, 8.507059e+37
          %v1951 = vand.u32 %v1922, 2147483648
          %v1952 = vor.u32 1.1754944e-38, %v1951
          %v1953 = vsel %vm1950, %v1952, %v1948
          %v1954 = vmul.f32 1.0, %v1953
          %v1955 = vrcp.pop %v1923
          %v1956 = vmul.f32 %v1923, %v1955
          %v1957 = vsub.f32 1.0, %v1956
          %v1958 = vmul.f32 %v1955, %v1957
          %v1959 = vadd.f32 %v1955, %v1958
          %vm1960 = vweird.f32 %v1923
          %vm1961 = vweird.f32 %v1955
          %vm1962 = vmor %vm1960, %vm1961
          %v1963 = vsel %vm1962, %v1955, %v1959
          %v1964 = vand.u32 2147483647, %v1923
          %vm1965 = vcmp.eq.f32.partialorder %v1964, 8.507059e+37
          %v1966 = vand.u32 %v1923, 2147483648
          %v1967 = vor.u32 1.1754944e-38, %v1966
          %v1968 = vsel %vm1965, %v1967, %v1963
          %v1969 = vmul.f32 1.0, %v1968
          %v1970 = vrcp.pop %v1924
          %v1971 = vmul.f32 %v1924, %v1970
          %v1972 = vsub.f32 1.0, %v1971
          %v1973 = vmul.f32 %v1970, %v1972
          %v1974 = vadd.f32 %v1970, %v1973
          %vm1975 = vweird.f32 %v1924
          %vm1976 = vweird.f32 %v1970
          %vm1977 = vmor %vm1975, %vm1976
          %v1978 = vsel %vm1977, %v1970, %v1974
          %v1979 = vand.u32 2147483647, %v1924
          %vm1980 = vcmp.eq.f32.partialorder %v1979, 8.507059e+37
          %v1981 = vand.u32 %v1924, 2147483648
          %v1982 = vor.u32 1.1754944e-38, %v1981
          %v1983 = vsel %vm1980, %v1982, %v1978
          %v1984 = vmul.f32 1.0, %v1983
          %v1985 = vrcp.pop %v1925
          %v1986 = vmul.f32 %v1925, %v1985
          %v1987 = vsub.f32 1.0, %v1986
          %v1988 = vmul.f32 %v1985, %v1987
          %v1989 = vadd.f32 %v1985, %v1988
          %vm1990 = vweird.f32 %v1925
          %vm1991 = vweird.f32 %v1985
          %vm1992 = vmor %vm1990, %vm1991
          %v1993 = vsel %vm1992, %v1985, %v1989
          %v1994 = vand.u32 2147483647, %v1925
          %vm1995 = vcmp.eq.f32.partialorder %v1994, 8.507059e+37
          %v1996 = vand.u32 %v1925, 2147483648
          %v1997 = vor.u32 1.1754944e-38, %v1996
          %v1998 = vsel %vm1995, %v1997, %v1993
          %v1999 = vmul.f32 1.0, %v1998
          %v2000 = vrcp.pop %v1926
          %v2001 = vmul.f32 %v1926, %v2000
          %v2002 = vsub.f32 1.0, %v2001
          %v2003 = vmul.f32 %v2000, %v2002
          %v2004 = vadd.f32 %v2000, %v2003
          %vm2005 = vweird.f32 %v1926
          %vm2006 = vweird.f32 %v2000
          %vm2007 = vmor %vm2005, %vm2006
          %v2008 = vsel %vm2007, %v2000, %v2004
          %v2009 = vand.u32 2147483647, %v1926
          %vm2010 = vcmp.eq.f32.partialorder %v2009, 8.507059e+37
          %v2011 = vand.u32 %v1926, 2147483648
          %v2012 = vor.u32 1.1754944e-38, %v2011
          %v2013 = vsel %vm2010, %v2012, %v2008
          %v2014 = vmul.f32 1.0, %v2013
          %v2015 = vrcp.pop %v1927
          %v2016 = vmul.f32 %v1927, %v2015
          %v2017 = vsub.f32 1.0, %v2016
          %v2018 = vmul.f32 %v2015, %v2017
          %v2019 = vadd.f32 %v2015, %v2018
          %vm2020 = vweird.f32 %v1927
          %vm2021 = vweird.f32 %v2015
          %vm2022 = vmor %vm2020, %vm2021
          %v2023 = vsel %vm2022, %v2015, %v2019
          %v2024 = vand.u32 2147483647, %v1927
          %vm2025 = vcmp.eq.f32.partialorder %v2024, 8.507059e+37
          %v2026 = vand.u32 %v1927, 2147483648
          %v2027 = vor.u32 1.1754944e-38, %v2026
          %v2028 = vsel %vm2025, %v2027, %v2023
          %v2029 = vmul.f32 1.0, %v2028
          %v2030 = vrcp.pop %v1928
          %v2031 = vmul.f32 %v1928, %v2030
          %v2032 = vsub.f32 1.0, %v2031
          %v2033 = vmul.f32 %v2030, %v2032
          %v2034 = vadd.f32 %v2030, %v2033
          %vm2035 = vweird.f32 %v1928
          %vm2036 = vweird.f32 %v2030
          %vm2037 = vmor %vm2035, %vm2036
          %v2038 = vsel %vm2037, %v2030, %v2034
          %v2039 = vand.u32 2147483647, %v1928
          %vm2040 = vcmp.eq.f32.partialorder %v2039, 8.507059e+37
          %v2041 = vand.u32 %v1928, 2147483648
          %v2042 = vor.u32 1.1754944e-38, %v2041
          %v2043 = vsel %vm2040, %v2042, %v2038
          %v2044 = vmul.f32 1.0, %v2043
          %v2045 = vrcp.pop %v1929
          %v2046 = vmul.f32 %v1929, %v2045
          %v2047 = vsub.f32 1.0, %v2046
          %v2048 = vmul.f32 %v2045, %v2047
          %v2049 = vadd.f32 %v2045, %v2048
          %vm2050 = vweird.f32 %v1929
          %vm2051 = vweird.f32 %v2045
          %vm2052 = vmor %vm2050, %vm2051
          %v2053 = vsel %vm2052, %v2045, %v2049
          %v2054 = vand.u32 2147483647, %v1929
          %vm2055 = vcmp.eq.f32.partialorder %v2054, 8.507059e+37
          %v2056 = vand.u32 %v1929, 2147483648
          %v2057 = vor.u32 1.1754944e-38, %v2056
          %v2058 = vsel %vm2055, %v2057, %v2053
          %v2059 = vmul.f32 1.0, %v2058
          %v2060 = vrcp.pop %v1930
          %v2061 = vmul.f32 %v1930, %v2060
          %v2062 = vsub.f32 1.0, %v2061
          %v2063 = vmul.f32 %v2060, %v2062
          %v2064 = vadd.f32 %v2060, %v2063
          %vm2065 = vweird.f32 %v1930
          %vm2066 = vweird.f32 %v2060
          %vm2067 = vmor %vm2065, %vm2066
          %v2068 = vsel %vm2067, %v2060, %v2064
          %v2069 = vand.u32 2147483647, %v1930
          %vm2070 = vcmp.eq.f32.partialorder %v2069, 8.507059e+37
          %v2071 = vand.u32 %v1930, 2147483648
          %v2072 = vor.u32 1.1754944e-38, %v2071
          %v2073 = vsel %vm2070, %v2072, %v2068
          %v2074 = vmul.f32 1.0, %v2073
          %v2075 = vrcp.pop %v1931
          %v2076 = vmul.f32 %v1931, %v2075
          %v2077 = vsub.f32 1.0, %v2076
          %v2078 = vmul.f32 %v2075, %v2077
          %v2079 = vadd.f32 %v2075, %v2078
          %vm2080 = vweird.f32 %v1931
          %vm2081 = vweird.f32 %v2075
          %vm2082 = vmor %vm2080, %vm2081
          %v2083 = vsel %vm2082, %v2075, %v2079
          %v2084 = vand.u32 2147483647, %v1931
          %vm2085 = vcmp.eq.f32.partialorder %v2084, 8.507059e+37
          %v2086 = vand.u32 %v1931, 2147483648
          %v2087 = vor.u32 1.1754944e-38, %v2086
          %v2088 = vsel %vm2085, %v2087, %v2083
          %v2089 = vmul.f32 1.0, %v2088
          %v2090 = vrcp.pop %v1932
          %v2091 = vmul.f32 %v1932, %v2090
          %v2092 = vsub.f32 1.0, %v2091
          %v2093 = vmul.f32 %v2090, %v2092
          %v2094 = vadd.f32 %v2090, %v2093
          %vm2095 = vweird.f32 %v1932
          %vm2096 = vweird.f32 %v2090
          %vm2097 = vmor %vm2095, %vm2096
          %v2098 = vsel %vm2097, %v2090, %v2094
          %v2099 = vand.u32 2147483647, %v1932
          %vm2100 = vcmp.eq.f32.partialorder %v2099, 8.507059e+37
          %v2101 = vand.u32 %v1932, 2147483648
          %v2102 = vor.u32 1.1754944e-38, %v2101
          %v2103 = vsel %vm2100, %v2102, %v2098
          %v2104 = vmul.f32 1.0, %v2103
          %v2105 = vrcp.pop %v1933
          %v2106 = vmul.f32 %v1933, %v2105
          %v2107 = vsub.f32 1.0, %v2106
          %v2108 = vmul.f32 %v2105, %v2107
          %v2109 = vadd.f32 %v2105, %v2108
          %vm2110 = vweird.f32 %v1933
          %vm2111 = vweird.f32 %v2105
          %vm2112 = vmor %vm2110, %vm2111
          %v2113 = vsel %vm2112, %v2105, %v2109
          %v2114 = vand.u32 2147483647, %v1933
          %vm2115 = vcmp.eq.f32.partialorder %v2114, 8.507059e+37
          %v2116 = vand.u32 %v1933, 2147483648
          %v2117 = vor.u32 1.1754944e-38, %v2116
          %v2118 = vsel %vm2115, %v2117, %v2113
          %v2119 = vmul.f32 1.0, %v2118
          %v2120 = vrcp.pop %v1934
          %v2121 = vmul.f32 %v1934, %v2120
          %v2122 = vsub.f32 1.0, %v2121
          %v2123 = vmul.f32 %v2120, %v2122
          %v2124 = vadd.f32 %v2120, %v2123
          %vm2125 = vweird.f32 %v1934
          %vm2126 = vweird.f32 %v2120
          %vm2127 = vmor %vm2125, %vm2126
          %v2128 = vsel %vm2127, %v2120, %v2124
          %v2129 = vand.u32 2147483647, %v1934
          %vm2130 = vcmp.eq.f32.partialorder %v2129, 8.507059e+37
          %v2131 = vand.u32 %v1934, 2147483648
          %v2132 = vor.u32 1.1754944e-38, %v2131
          %v2133 = vsel %vm2130, %v2132, %v2128
          %v2134 = vmul.f32 1.0, %v2133
          %v2135 = vrcp.pop %v1935
          %v2136 = vmul.f32 %v1935, %v2135
          %v2137 = vsub.f32 1.0, %v2136
          %v2138 = vmul.f32 %v2135, %v2137
          %v2139 = vadd.f32 %v2135, %v2138
          %vm2140 = vweird.f32 %v1935
          %vm2141 = vweird.f32 %v2135
          %vm2142 = vmor %vm2140, %vm2141
          %v2143 = vsel %vm2142, %v2135, %v2139
          %v2144 = vand.u32 2147483647, %v1935
          %vm2145 = vcmp.eq.f32.partialorder %v2144, 8.507059e+37
          %v2146 = vand.u32 %v1935, 2147483648
          %v2147 = vor.u32 1.1754944e-38, %v2146
          %v2148 = vsel %vm2145, %v2147, %v2143
          %v2149 = vmul.f32 1.0, %v2148
          %v2150 = vrcp.pop %v1936
          %v2151 = vmul.f32 %v1936, %v2150
          %v2152 = vsub.f32 1.0, %v2151
          %v2153 = vmul.f32 %v2150, %v2152
          %v2154 = vadd.f32 %v2150, %v2153
          %vm2155 = vweird.f32 %v1936
          %vm2156 = vweird.f32 %v2150
          %vm2157 = vmor %vm2155, %vm2156
          %v2158 = vsel %vm2157, %v2150, %v2154
          %v2159 = vand.u32 2147483647, %v1936
          %vm2160 = vcmp.eq.f32.partialorder %v2159, 8.507059e+37
          %v2161 = vand.u32 %v1936, 2147483648
          %v2162 = vor.u32 1.1754944e-38, %v2161
          %v2163 = vsel %vm2160, %v2162, %v2158
          %v2164 = vmul.f32 1.0, %v2163
          %v2165 = vrcp.pop %v1937
          %v2166 = vmul.f32 %v1937, %v2165
          %v2167 = vsub.f32 1.0, %v2166
          %v2168 = vmul.f32 %v2165, %v2167
          %v2169 = vadd.f32 %v2165, %v2168
          %vm2170 = vweird.f32 %v1937
          %vm2171 = vweird.f32 %v2165
          %vm2172 = vmor %vm2170, %vm2171
          %v2173 = vsel %vm2172, %v2165, %v2169
          %v2174 = vand.u32 2147483647, %v1937
          %vm2175 = vcmp.eq.f32.partialorder %v2174, 8.507059e+37
          %v2176 = vand.u32 %v1937, 2147483648
          %v2177 = vor.u32 1.1754944e-38, %v2176
          %v2178 = vsel %vm2175, %v2177, %v2173
          %v2179 = vmul.f32 1.0, %v2178
          %v2180 = vrcp.pop %v1938
          %v2181 = vmul.f32 %v1938, %v2180
          %v2182 = vsub.f32 1.0, %v2181
          %v2183 = vmul.f32 %v2180, %v2182
          %v2184 = vadd.f32 %v2180, %v2183
          %vm2185 = vweird.f32 %v1938
          %vm2186 = vweird.f32 %v2180
          %vm2187 = vmor %vm2185, %vm2186
          %v2188 = vsel %vm2187, %v2180, %v2184
          %v2189 = vand.u32 2147483647, %v1938
          %vm2190 = vcmp.eq.f32.partialorder %v2189, 8.507059e+37
          %v2191 = vand.u32 %v1938, 2147483648
          %v2192 = vor.u32 1.1754944e-38, %v2191
          %v2193 = vsel %vm2190, %v2192, %v2188
          %v2194 = vmul.f32 1.0, %v2193
          %v2195 = vrcp.pop %v1939
          %v2196 = vmul.f32 %v1939, %v2195
          %v2197 = vsub.f32 1.0, %v2196
          %v2198 = vmul.f32 %v2195, %v2197
          %v2199 = vadd.f32 %v2195, %v2198
          %vm2200 = vweird.f32 %v1939
          %vm2201 = vweird.f32 %v2195
          %vm2202 = vmor %vm2200, %vm2201
          %v2203 = vsel %vm2202, %v2195, %v2199
          %v2204 = vand.u32 2147483647, %v1939
          %vm2205 = vcmp.eq.f32.partialorder %v2204, 8.507059e+37
          %v2206 = vand.u32 %v1939, 2147483648
          %v2207 = vor.u32 1.1754944e-38, %v2206
          %v2208 = vsel %vm2205, %v2207, %v2203
          %v2209 = vmul.f32 1.0, %v2208
          %vm2210 = vcmask 7168
          %2211 = vst.msk [vmem:[%s320] sm:$0xff] %vm2210, %v1954
          %2212 = vst.msk [vmem:[%s320 + $0x8] sm:$0xff] %vm2210, %v1969
          %2213 = vst.msk [vmem:[%s320 + $0x10] sm:$0xff] %vm2210, %v1984
          %2214 = vst.msk [vmem:[%s320 + $0x18] sm:$0xff] %vm2210, %v1999
          %2215 = vst.msk [vmem:[%s320 + $0x20] sm:$0xff] %vm2210, %v2014
          %2216 = vst.msk [vmem:[%s320 + $0x28] sm:$0xff] %vm2210, %v2029
          %2217 = vst.msk [vmem:[%s320 + $0x30] sm:$0xff] %vm2210, %v2044
          %2218 = vst.msk [vmem:[%s320 + $0x38] sm:$0xff] %vm2210, %v2059
          %2219 = vst.msk [vmem:[%s320 + $0x40] sm:$0xff] %vm2210, %v2074
          %2220 = vst.msk [vmem:[%s320 + $0x48] sm:$0xff] %vm2210, %v2089
          %2221 = vst.msk [vmem:[%s320 + $0x50] sm:$0xff] %vm2210, %v2104
          %2222 = vst.msk [vmem:[%s320 + $0x58] sm:$0xff] %vm2210, %v2119
          %2223 = vst.msk [vmem:[%s320 + $0x60] sm:$0xff] %vm2210, %v2134
          %2224 = vst.msk [vmem:[%s320 + $0x68] sm:$0xff] %vm2210, %v2149
          %2225 = vst.msk [vmem:[%s320 + $0x70] sm:$0xff] %vm2210, %v2164
          %2226 = vst.msk [vmem:[%s320 + $0x78] sm:$0xff] %vm2210, %v2179
          %2227 = vst.msk [vmem:[%s320 + $0x80] sm:$0xff] %vm2210, %v2194
          %2228 = vst.msk [vmem:[%s320 + $0x88] sm:$0xff] %vm2210, %v2209
        $region60: #{tpu_custom_call.1} parent=39 // pred_fallthru
          _
        %s2229 = smul.u32 18, %s26
        %p2230 = scmp.lt.s32.totalorder %s2229, 35
        %s2231 = scalar_select %p2230, %s2229, 35
        %s2232 = smul.addr %s2231, 8
        %s2233 = scalar_lea.vmem %s5, %s2232
        // Predicated region
        $region61: #{tpu_custom_call.1} parent=39 // pred_check
          %p2234 = pneg %p169
        $region62: #{tpu_custom_call.1} parent=39 // pred_check_branch
          %2236 = sbr.rel (%p2234) target = $region64
        $region63: #{tpu_custom_call.1} parent=39 // pred_region
          %s2237 = smul.u32 18, %s26
        $region64: #{tpu_custom_call.1} parent=39 // pred_fallthru
          _
      $region40: #{tpu_custom_call.1} parent=5 // pred_fallthru
        _
      %p2238 = scmp.le.s32.totalorder 2, %s17
      // Predicated region
      $region65: #{tpu_custom_call.1} parent=5 // pred_check
        %p2239 = pneg %p2238
      $region66: #{tpu_custom_call.1} parent=5 // pred_check_branch
        %2241 = sbr.rel (%p2239) target = $region68
      $region67: #{tpu_custom_call.1} parent=5 // pred_region
        %s2242 = ssub.s32 %s17, 2
        // Predicated region
        $region69: #{tpu_custom_call.1} parent=67 // pred_check
          %p2243 = pneg %p175
        $region70: #{tpu_custom_call.1} parent=67 // pred_check_branch
          %2245 = sbr.rel (%p2243) target = $region72
        $region71: #{tpu_custom_call.1} parent=67 // pred_region
          %s2246 = smul.u32 18, %s28
          %p2247 = scmp.lt.s32.totalorder %s2246, 35
          %s2248 = scalar_select %p2247, %s2246, 35
          %s2249 = smul.addr %s2248, 8
          %s2250 = scalar_lea.vmem %s5, %s2249
        $region72: #{tpu_custom_call.1} parent=67 // pred_fallthru
          _
      $region68: #{tpu_custom_call.1} parent=5 // pred_fallthru
        _
    $region6: #{tpu_custom_call.1} parent=1 // loop_footer
      %s21 = sadd.s32 1, %s17
    $region7: #{tpu_custom_call.1} parent=1 // loop_footer_branch
      %16 = sbr.rel target = $region3
    $region8: #{tpu_custom_call.1} parent=1 // loop_exit
      _
    %2251 = vsyncpa [#allocation5], 1
    %s2252 = scalar_lea.sflag [#allocation5], 1
    %2253 = vsyncpa %s2252, 1
    %2254 = vsyncpa [#allocation7], 1
    %s2255 = scalar_lea.sflag [#allocation7], 1
    %2256 = vsyncpa %s2255, 1

</llo_original>
